<compile_context>
chip_gen: v6e
topology: v6e:2x2x1
jax: 0.10.0
libtpu: 0.0.40
codegen_flags: <defaults>
</compile_context>

<pallas_src>
import functools

import jax
import jax.numpy as jnp
from jax import lax
from jax.experimental import pallas as pl
from jax.experimental.pallas import tpu as pltpu


def _round_up(n, m):
    return (n + m - 1) // m * m


def _vmem_capacity_bytes():
    try:
        return int(pltpu.get_tpu_info().vmem_capacity_bytes)
    except Exception:
        return 64 * 1024 * 1024  # conservative (v7x-sized) fallback


def lstm_kernel(x_ref, wx_ref, wh_ref, b_ref, wfc_ref, bfc_ref,
                out_ref, h_scr, c_scr, gx_scr, hseq_scr,
                *, ts, bb, hp, unroll):
    """One grid step = (one batch block) x (one chunk of `ts` timesteps).

    x_ref   : (ts*bb, Din)  bf16, time-major rows (row = t*bb + b)
    wx_ref  : (Din, 4*hp)   bf16, gate blocks [f,i,g,o], 128-lane aligned
    wh_ref  : (hp, 4*hp)    bf16 (padded rows are zero)
    b_ref   : (1, 4*hp)     f32
    wfc_ref : (hp, Dp)      bf16 (padded rows/cols are zero)
    bfc_ref : (1, Dp)       f32
    out_ref : (ts*bb, Dp)   f32, lane-dense
    h_scr/c_scr : (bb, hp)  f32 recurrent state, persists across chunk steps
    gx_scr  : (ts*bb, 4*hp) f32 precomputed x@Wx + b for the chunk
    hseq_scr: (ts*bb, hp)   f32 hidden states of the chunk (fed to batched fc)
    """
    @pl.when(pl.program_id(1) == 0)
    def _():
        h_scr[...] = jnp.zeros_like(h_scr)
        c_scr[...] = jnp.zeros_like(c_scr)

    # Stage 1: one big bf16 MXU matmul = input projection of all ts steps.
    gx_scr[...] = (jnp.dot(x_ref[...], wx_ref[...],
                           preferred_element_type=jnp.float32)
                   + b_ref[...])
    # TODO(synk): interleave Stage 1 in per-unroll-block strips under Stage 2 to
    # shrink gx_scr to a 2-strip buffer and hide it under the recurrence.

    wh = wh_ref[...]  # bf16; resident across the loop
    # TODO(synk): pltpu.matmul_push_rhs could stage Wh on the MXU once per chunk
    # instead of re-staging it every timestep of the latency-bound recurrence.

    # Stage 2: the inherently sequential recurrence.  Per step: one
    # (bb,hp)@(hp,4hp) bf16 MXU matmul + f32 VPU/EUP elementwise gate math.
    def step(t, carry):
        row = pl.multiple_of(t * bb, 8)
        h_t = h_scr[...]
        c_t = c_scr[...]
        gates = gx_scr[pl.ds(row, bb), :] + jnp.dot(
            h_t.astype(wh.dtype), wh, preferred_element_type=jnp.float32)

        f_t = jax.nn.sigmoid(gates[:, 0 * hp:1 * hp])
        i_t = jax.nn.sigmoid(gates[:, 1 * hp:2 * hp])
        g_t = jnp.tanh(gates[:, 2 * hp:3 * hp])
        o_t = jax.nn.sigmoid(gates[:, 3 * hp:4 * hp])

        c_new = f_t * c_t + i_t * g_t
        h_new = o_t * jnp.tanh(c_new)

        c_scr[...] = c_new
        h_scr[...] = h_new
        hseq_scr[pl.ds(row, bb), :] = h_new
        return carry

    lax.fori_loop(0, ts, step, 0, unroll=unroll)

    # Stage 3: batched bf16 fc projection for the whole chunk (lane-dense store).
    out_ref[...] = (jnp.dot(hseq_scr[...].astype(wfc_ref.dtype), wfc_ref[...],
                            preferred_element_type=jnp.float32)
                    + bfc_ref[...]).astype(out_ref.dtype)


def pack_params(params):
    """Pack / pad gate weights once (NOT per forward call).

    Each gate's weights occupy their own 128-lane-aligned column block; padded
    rows/cols are zero so padded hidden lanes stay exactly 0 through the
    recurrence.  Matmul operands are stored in bf16 (biases stay f32).
    """
    wx, wh, b, wfc, bfc = [jnp.asarray(p, jnp.float32) for p in params]
    Din = wx.shape[0]
    H = wh.shape[0]
    Dout = wfc.shape[1]
    Hp = _round_up(H, 128)
    Dp = _round_up(Dout, 128)

    wx_p = jnp.zeros((Din, 4 * Hp), jnp.float32)
    wh_p = jnp.zeros((Hp, 4 * Hp), jnp.float32)
    b_p = jnp.zeros((1, 4 * Hp), jnp.float32)
    for k in range(4):
        wx_p = wx_p.at[:, k * Hp:k * Hp + H].set(wx[:, k * H:(k + 1) * H])
        wh_p = wh_p.at[:H, k * Hp:k * Hp + H].set(wh[:, k * H:(k + 1) * H])
        b_p = b_p.at[:, k * Hp:k * Hp + H].set(b[:, k * H:(k + 1) * H])
    wfc_p = jnp.zeros((Hp, Dp), jnp.float32).at[:H, :Dout].set(wfc)
    bfc_p = jnp.zeros((1, Dp), jnp.float32).at[:, :Dout].set(bfc)

    return {
        "wx": wx_p.astype(jnp.bfloat16),
        "wh": wh_p.astype(jnp.bfloat16),
        "b": b_p,
        "wfc": wfc_p.astype(jnp.bfloat16),
        "bfc": bfc_p,
        "Din": Din, "H": H, "Dout": Dout, "Hp": Hp, "Dp": Dp,
    }


def custom_lstm_forward(x, packed, *, ts_chunk=None, batch_block=None):
    """x: (B, S, D_in) float -> (B, S, D_out) float32. `packed` = pack_params(...)."""
    B, S, Din = x.shape
    assert Din == packed["Din"]
    Hp, Dp, Dout = packed["Hp"], packed["Dp"], packed["Dout"]
    f32, bf16 = jnp.float32, jnp.bfloat16

    # --- batch blocking (sublane-aligned; big batches split for v7x's 2 TCs) ---
    Bp = _round_up(B, 8)
    # TODO(synk): at Bp=8 the recurrent matmul uses <8% of MXU rows; batching
    # independent sequences toward 128+ rows is the biggest Stage-2 lever.
    if batch_block is None:
        bb = Bp if Bp <= 256 else 128
    else:
        bb = _round_up(min(batch_block, Bp), 8)
    Bp = _round_up(Bp, bb)
    n_bb = Bp // bb

    # --- generation-aware chunk length & VMEM limit ---
    vmem_cap = _vmem_capacity_bytes()
    budget = vmem_cap * 3 // 4
    fixed = (2 * ((Din + Hp) * 4 * Hp + Hp * Dp) * 2      # bf16 weights (x2 buf, conservative)
             + 2 * (4 * Hp + Dp) * 4                      # f32 biases
             + 2 * bb * Hp * 4)                           # h / c scratch
    per_ts = bb * (2 * 2 * Din      # x tile bf16, double-buffered
                   + 2 * 4 * Dp     # out tile f32, double-buffered
                   + 4 * 4 * Hp     # gx scratch f32
                   + 4 * Hp)        # hseq scratch f32
    if ts_chunk is None:
        TS = max(1, (budget - fixed) // per_ts)
        TS = int(min(TS, 512, S))
        if TS >= 8:
            TS = TS // 8 * 8
    else:
        TS = int(min(ts_chunk, S))
    Sp = _round_up(S, TS)
    n_chunks = Sp // TS
    unroll = next((u for u in (8, 4, 2) if TS % u == 0), 1)
    vmem_limit = int(min(vmem_cap * 7 // 8, vmem_cap - (4 << 20)))

    # --- data layout: time-major, batch padded, batch-blocked ---
    x_tm = jnp.transpose(x.astype(bf16), (1, 0, 2))             # (S, B, Din)
    x_tm = jnp.pad(x_tm, ((0, Sp - S), (0, Bp - B), (0, 0)))    # (Sp, Bp, Din)
    x_blk = (x_tm.reshape(Sp, n_bb, bb, Din)
                 .transpose(1, 0, 2, 3)
                 .reshape(n_bb, Sp * bb, Din))                  # row = t*bb + b
    # TODO(synk): this wrapper transpose/pad is an extra HBM pass; for very long
    # sequences it could be folded into the BlockSpec with an in-kernel transpose.

    kernel = functools.partial(lstm_kernel, ts=TS, bb=bb, hp=Hp, unroll=unroll)

    def run(single_buffer_weights):
        wmode = ({"pipeline_mode": pl.Buffered(1)}
                 if single_buffer_weights else {})
        grid_spec = pltpu.PrefetchScalarGridSpec(
            num_scalar_prefetch=0,
            grid=(n_bb, n_chunks),                      # carry axis last
            in_specs=[
                pl.BlockSpec((None, TS * bb, Din), lambda jb, ic: (jb, ic, 0)),
                pl.BlockSpec((Din, 4 * Hp), lambda jb, ic: (0, 0), **wmode),
                pl.BlockSpec((Hp, 4 * Hp), lambda jb, ic: (0, 0), **wmode),
                pl.BlockSpec((1, 4 * Hp), lambda jb, ic: (0, 0), **wmode),
                pl.BlockSpec((Hp, Dp), lambda jb, ic: (0, 0), **wmode),
                pl.BlockSpec((1, Dp), lambda jb, ic: (0, 0), **wmode),
            ],
            out_specs=pl.BlockSpec((None, TS * bb, Dp), lambda jb, ic: (jb, ic, 0)),
            scratch_shapes=[
                pltpu.VMEM((bb, Hp), f32),              # h_t
                pltpu.VMEM((bb, Hp), f32),              # c_t
                pltpu.VMEM((TS * bb, 4 * Hp), f32),     # x@Wx + b for the chunk
                pltpu.VMEM((TS * bb, Hp), f32),         # hidden states of the chunk
            ],
        )
        return pl.pallas_call(
            kernel,
            out_shape=jax.ShapeDtypeStruct((n_bb, Sp * bb, Dp), f32),
            grid_spec=grid_spec,
            compiler_params=pltpu.CompilerParams(
                dimension_semantics=("parallel", "arbitrary"),
                vmem_limit_bytes=vmem_limit,
            ),
        )(x_blk, packed["wx"], packed["wh"], packed["b"],
          packed["wfc"], packed["bfc"])

    try:
        out_blk = run(True)
    except Exception:
        # pl.Buffered(1) on resident weights is a pure VMEM saving; fall back to
        # default double-buffering if this build rejects single buffering.
        out_blk = run(False)

    out = (out_blk.reshape(n_bb, Sp, bb, Dp)
                  .transpose(1, 0, 2, 3)
                  .reshape(Sp, Bp, Dp)[:S, :B, :Dout])
    return jnp.transpose(out, (1, 0, 2))                # (B, S, D_out)


def reference_lstm(x, params):
    """Pure-JAX f32 reference mirroring the PyTorch module exactly."""
    wx, wh, b, wfc, bfc = params
    B, S, Din = x.shape
    H = wh.shape[0]
    h = jnp.zeros((B, H), jnp.float32)
    c = jnp.zeros((B, H), jnp.float32)
    outs = []
    for t in range(S):
        x_t = x[:, t, :]
        gates = x_t @ wx + h @ wh + b
        f = jax.nn.sigmoid(gates[:, 0 * H:1 * H])
        i = jax.nn.sigmoid(gates[:, 1 * H:2 * H])
        g = jnp.tanh(gates[:, 2 * H:3 * H])
        o = jax.nn.sigmoid(gates[:, 3 * H:4 * H])
        c = f * c + i * g
        h = o * jnp.tanh(c)
        outs.append(h)
    outs = jnp.stack(outs, axis=1)           # (B, S, H)
    return outs @ wfc + bfc                  # (B, S, D_out)


def init_params(key, input_dim, hidden_dim, output_dim):
    """Deterministic synthetic parameters (shapes match the nn.Linear layers)."""
    ks = jax.random.split(key, 5)
    scale_g = 1.0 / jnp.sqrt(input_dim + hidden_dim)
    scale_fc = 1.0 / jnp.sqrt(hidden_dim)
    # gate order along the 4H axis: [forget, input, cell, output]
    wx = jax.random.uniform(ks[0], (input_dim, 4 * hidden_dim),
                            jnp.float32, -scale_g, scale_g)
    wh = jax.random.uniform(ks[1], (hidden_dim, 4 * hidden_dim),
                            jnp.float32, -scale_g, scale_g)
    b = jax.random.uniform(ks[2], (1, 4 * hidden_dim),
                           jnp.float32, -scale_g, scale_g)
    wfc = jax.random.uniform(ks[3], (hidden_dim, output_dim),
                             jnp.float32, -scale_fc, scale_fc)
    bfc = jax.random.uniform(ks[4], (1, output_dim),
                             jnp.float32, -scale_fc, scale_fc)
    return wx, wh, b, wfc, bfc


if __name__ == "__main__":
    input_dim, hidden_dim, output_dim = 16, 32, 8
    key = jax.random.PRNGKey(0)
    k_x, k_p, k_x2, k_x3 = jax.random.split(key, 4)
    params = init_params(k_p, input_dim, hidden_dim, output_dim)
    packed = pack_params(params)   # packed once, reused across calls

    TOL = dict(atol=3e-2, rtol=3e-2)   # bf16 MXU operands vs f32 reference

    # Case 1: shapes from the module file (batch_size=5, seq_len=3), auto chunking.
    B, S = 5, 3
    x = jax.random.normal(k_x, (B, S, input_dim), jnp.float32)
    out = jax.block_until_ready(custom_lstm_forward(x, packed))
    ref = reference_lstm(x, params)
    assert out.shape == (B, S, output_dim)
    assert jnp.allclose(out, ref, **TOL), "mismatch (auto chunk)"

    # Case 2: exercise the sequence grid with carried h/c state across chunks.
    B2, S2 = 5, 6
    x2 = jax.random.normal(k_x2, (B2, S2, input_dim), jnp.float32)
    out2 = jax.block_until_ready(custom_lstm_forward(x2, packed, ts_chunk=2))
    ref2 = reference_lstm(x2, params)
    assert out2.shape == (B2, S2, output_dim)
    assert jnp.allclose(out2, ref2, **TOL), "mismatch (chunked grid)"

    # Case 3: S not a multiple of the chunk length (zero-padded tail timesteps).
    B3, S3 = 5, 5
    x3 = jax.random.normal(k_x3, (B3, S3, input_dim), jnp.float32)
    out3 = jax.block_until_ready(custom_lstm_forward(x3, packed, ts_chunk=2))
    ref3 = reference_lstm(x3, params)
    assert out3.shape == (B3, S3, output_dim)
    assert jnp.allclose(out3, ref3, **TOL), "mismatch (padded tail chunk)"

    print("KERNEL_OK")
</pallas_src>

<mosaic_0001>
module attributes {stable_mosaic.version = 11 : i64} {
  func.func @lstm_kernel(%arg0: i32, %arg1: i32, %arg2: memref<1x24x16xbf16, #tpu.memory_space<vmem>>, %arg3: memref<16x512xbf16, #tpu.memory_space<vmem>>, %arg4: memref<128x512xbf16, #tpu.memory_space<vmem>>, %arg5: memref<1x512xf32, #tpu.memory_space<vmem>>, %arg6: memref<128x128xbf16, #tpu.memory_space<vmem>>, %arg7: memref<1x128xf32, #tpu.memory_space<vmem>>, %arg8: memref<1x24x128xf32, #tpu.memory_space<vmem>>, %arg9: memref<8x128xf32, #tpu.memory_space<vmem>>, %arg10: memref<8x128xf32, #tpu.memory_space<vmem>>, %arg11: memref<24x512xf32, #tpu.memory_space<vmem>>, %arg12: memref<24x128xf32, #tpu.memory_space<vmem>>) attributes {dimension_semantics = [#tpu.dimension_semantics<parallel>, #tpu.dimension_semantics<arbitrary>], iteration_bounds = array<i64: 1, 1>, scalar_prefetch = 0 : i64, scratch_operands = 4 : i64, tpu.core_type = #tpu.core_type<tc>, window_params = [{transform_indices = @transform_0, window_bounds = array<i64: 1, 24, 16>}, {pipeline_mode = #tpu.pipeline_mode<synchronous>, transform_indices = @transform_1, window_bounds = array<i64: 16, 512>}, {pipeline_mode = #tpu.pipeline_mode<synchronous>, transform_indices = @transform_2, window_bounds = array<i64: 128, 512>}, {pipeline_mode = #tpu.pipeline_mode<synchronous>, transform_indices = @transform_3, window_bounds = array<i64: 1, 512>}, {pipeline_mode = #tpu.pipeline_mode<synchronous>, transform_indices = @transform_4, window_bounds = array<i64: 128, 128>}, {pipeline_mode = #tpu.pipeline_mode<synchronous>, transform_indices = @transform_5, window_bounds = array<i64: 1, 128>}, {transform_indices = @transform_6, window_bounds = array<i64: 1, 24, 128>}]} {
    %c0_i32 = arith.constant 0 : i32
    %0 = arith.cmpi eq, %arg1, %c0_i32 : i32
    %1 = arith.extui %0 : i1 to i32
    %c0_i32_0 = arith.constant 0 : i32
    %2 = arith.cmpi ne, %1, %c0_i32_0 : i32
    scf.if %2 {
      %cst_23 = arith.constant 0.000000e+00 : f32
      %23 = vector.broadcast %cst_23 : f32 to vector<8x128xf32>
      %c0_24 = arith.constant 0 : index
      %c0_25 = arith.constant 0 : index
      %24 = vector.load %arg9[%c0_24, %c0_25] : memref<8x128xf32, #tpu.memory_space<vmem>>, vector<8x128xf32>
      tpu.vector_store %arg9[%c0_24, %c0_25], %23 {strides = array<i32>} : memref<8x128xf32, #tpu.memory_space<vmem>>, vector<8x128xf32>,
      %cst_26 = arith.constant 0.000000e+00 : f32
      %25 = vector.broadcast %cst_26 : f32 to vector<8x128xf32>
      %c0_27 = arith.constant 0 : index
      %c0_28 = arith.constant 0 : index
      %26 = vector.load %arg10[%c0_27, %c0_28] : memref<8x128xf32, #tpu.memory_space<vmem>>, vector<8x128xf32>
      tpu.vector_store %arg10[%c0_27, %c0_28], %25 {strides = array<i32>} : memref<8x128xf32, #tpu.memory_space<vmem>>, vector<8x128xf32>,
    } else {
    }
    %c0 = arith.constant 0 : index
    %c0_1 = arith.constant 0 : index
    %c0_2 = arith.constant 0 : index
    %3 = vector.load %arg2[%c0, %c0_1, %c0_2] : memref<1x24x16xbf16, #tpu.memory_space<vmem>>, vector<1x24x16xbf16>
    %4 = vector.shape_cast %3 : vector<1x24x16xbf16> to vector<24x16xbf16>
    %c0_3 = arith.constant 0 : index
    %c0_4 = arith.constant 0 : index
    %5 = vector.load %arg3[%c0_3, %c0_4] : memref<16x512xbf16, #tpu.memory_space<vmem>>, vector<16x512xbf16>
    %cst = arith.constant dense<0.000000e+00> : vector<24x512xf32>
    %6 = tpu.matmul %4, %5, %cst {dimension_numbers = #tpu.dot_dimension_numbers<[1], [0], [0], [1], [0, 0, 1, 1], [], []>} : vector<24x16xbf16>, vector<16x512xbf16>, vector<24x512xf32> -> vector<24x512xf32>
    %c0_5 = arith.constant 0 : index
    %c0_6 = arith.constant 0 : index
    %7 = vector.load %arg5[%c0_5, %c0_6] : memref<1x512xf32, #tpu.memory_space<vmem>>, vector<1x512xf32>
    %8 = vector.broadcast %7 : vector<1x512xf32> to vector<24x512xf32>
    %9 = arith.addf %6, %8 : vector<24x512xf32>
    %c0_7 = arith.constant 0 : index
    %c0_8 = arith.constant 0 : index
    %10 = vector.load %arg11[%c0_7, %c0_8] : memref<24x512xf32, #tpu.memory_space<vmem>>, vector<24x512xf32>
    tpu.vector_store %arg11[%c0_7, %c0_8], %9 {strides = array<i32>} : memref<24x512xf32, #tpu.memory_space<vmem>>, vector<24x512xf32>,
    %c0_9 = arith.constant 0 : index
    %c0_10 = arith.constant 0 : index
    %11 = vector.load %arg4[%c0_9, %c0_10] : memref<128x512xbf16, #tpu.memory_space<vmem>>, vector<128x512xbf16>
    %c0_i32_11 = arith.constant 0 : i32
    %c3_i32 = arith.constant 3 : i32
    %12 = arith.addi %c0_i32_11, %c3_i32 : i32
    %c1_i32 = arith.constant 1 : i32
    scf.for %arg13 = %c0_i32_11 to %12 step %c1_i32  : i32 {
      %c8_i32 = arith.constant 8 : i32
      %23 = arith.muli %arg13, %c8_i32 : i32
      %24 = tpu.assume_multiple %23, 8 : i32
      %c0_23 = arith.constant 0 : index
      %c0_24 = arith.constant 0 : index
      %25 = vector.load %arg9[%c0_23, %c0_24] : memref<8x128xf32, #tpu.memory_space<vmem>>, vector<8x128xf32>
      %c0_25 = arith.constant 0 : index
      %c0_26 = arith.constant 0 : index
      %26 = vector.load %arg10[%c0_25, %c0_26] : memref<8x128xf32, #tpu.memory_space<vmem>>, vector<8x128xf32>
      %27 = arith.index_cast %24 : i32 to index
      %c0_27 = arith.constant 0 : index
      %28 = vector.load %arg11[%27, %c0_27] : memref<24x512xf32, #tpu.memory_space<vmem>>, vector<8x512xf32>
      %29 = arith.truncf %25 : vector<8x128xf32> to vector<8x128xbf16>
      %cst_28 = arith.constant dense<0.000000e+00> : vector<8x512xf32>
      %30 = tpu.matmul %29, %11, %cst_28 {dimension_numbers = #tpu.dot_dimension_numbers<[1], [0], [0], [1], [0, 0, 1, 1], [], []>} : vector<8x128xbf16>, vector<128x512xbf16>, vector<8x512xf32> -> vector<8x512xf32>
      %31 = arith.addf %28, %30 : vector<8x512xf32>
      %32 = vector.extract_strided_slice %31 {offsets = [0, 0], sizes = [8, 128], strides = [1, 1]} : vector<8x512xf32> to vector<8x128xf32>
      %33 = arith.negf %32 : vector<8x128xf32>
      %34 = math.exp %33 : vector<8x128xf32>
      %cst_29 = arith.constant 1.000000e+00 : f32
      %35 = vector.broadcast %cst_29 : f32 to vector<8x128xf32>
      %36 = arith.addf %35, %34 : vector<8x128xf32>
      %37 = arith.divf %35, %36 : vector<8x128xf32>
      %38 = vector.extract_strided_slice %31 {offsets = [0, 128], sizes = [8, 128], strides = [1, 1]} : vector<8x512xf32> to vector<8x128xf32>
      %39 = arith.negf %38 : vector<8x128xf32>
      %40 = math.exp %39 : vector<8x128xf32>
      %cst_30 = arith.constant 1.000000e+00 : f32
      %41 = vector.broadcast %cst_30 : f32 to vector<8x128xf32>
      %42 = arith.addf %41, %40 : vector<8x128xf32>
      %43 = arith.divf %41, %42 : vector<8x128xf32>
      %44 = vector.extract_strided_slice %31 {offsets = [0, 256], sizes = [8, 128], strides = [1, 1]} : vector<8x512xf32> to vector<8x128xf32>
      %45 = math.tanh %44 : vector<8x128xf32>
      %46 = vector.extract_strided_slice %31 {offsets = [0, 384], sizes = [8, 128], strides = [1, 1]} : vector<8x512xf32> to vector<8x128xf32>
      %47 = arith.negf %46 : vector<8x128xf32>
      %48 = math.exp %47 : vector<8x128xf32>
      %cst_31 = arith.constant 1.000000e+00 : f32
      %49 = vector.broadcast %cst_31 : f32 to vector<8x128xf32>
      %50 = arith.addf %49, %48 : vector<8x128xf32>
      %51 = arith.divf %49, %50 : vector<8x128xf32>
      %52 = arith.mulf %37, %26 : vector<8x128xf32>
      %53 = arith.mulf %43, %45 : vector<8x128xf32>
      %54 = arith.addf %52, %53 : vector<8x128xf32>
      %55 = math.tanh %54 : vector<8x128xf32>
      %56 = arith.mulf %51, %55 : vector<8x128xf32>
      %c0_32 = arith.constant 0 : index
      %c0_33 = arith.constant 0 : index
      %57 = vector.load %arg10[%c0_32, %c0_33] : memref<8x128xf32, #tpu.memory_space<vmem>>, vector<8x128xf32>
      tpu.vector_store %arg10[%c0_32, %c0_33], %54 {strides = array<i32>} : memref<8x128xf32, #tpu.memory_space<vmem>>, vector<8x128xf32>,
      %c0_34 = arith.constant 0 : index
      %c0_35 = arith.constant 0 : index
      %58 = vector.load %arg9[%c0_34, %c0_35] : memref<8x128xf32, #tpu.memory_space<vmem>>, vector<8x128xf32>
      tpu.vector_store %arg9[%c0_34, %c0_35], %56 {strides = array<i32>} : memref<8x128xf32, #tpu.memory_space<vmem>>, vector<8x128xf32>,
      %59 = arith.index_cast %24 : i32 to index
      %c0_36 = arith.constant 0 : index
      %60 = vector.load %arg12[%59, %c0_36] : memref<24x128xf32, #tpu.memory_space<vmem>>, vector<8x128xf32>
      tpu.vector_store %arg12[%59, %c0_36], %56 {strides = array<i32>} : memref<24x128xf32, #tpu.memory_space<vmem>>, vector<8x128xf32>,
    }
    %c3_i32_12 = arith.constant 3 : i32
    %c0_13 = arith.constant 0 : index
    %c0_14 = arith.constant 0 : index
    %13 = vector.load %arg12[%c0_13, %c0_14] : memref<24x128xf32, #tpu.memory_space<vmem>>, vector<24x128xf32>
    %14 = arith.truncf %13 : vector<24x128xf32> to vector<24x128xbf16>
    %c0_15 = arith.constant 0 : index
    %c0_16 = arith.constant 0 : index
    %15 = vector.load %arg6[%c0_15, %c0_16] : memref<128x128xbf16, #tpu.memory_space<vmem>>, vector<128x128xbf16>
    %cst_17 = arith.constant dense<0.000000e+00> : vector<24x128xf32>
    %16 = tpu.matmul %14, %15, %cst_17 {dimension_numbers = #tpu.dot_dimension_numbers<[1], [0], [0], [1], [0, 0, 1, 1], [], []>} : vector<24x128xbf16>, vector<128x128xbf16>, vector<24x128xf32> -> vector<24x128xf32>
    %c0_18 = arith.constant 0 : index
    %c0_19 = arith.constant 0 : index
    %17 = vector.load %arg7[%c0_18, %c0_19] : memref<1x128xf32, #tpu.memory_space<vmem>>, vector<1x128xf32>
    %18 = vector.broadcast %17 : vector<1x128xf32> to vector<24x128xf32>
    %19 = arith.addf %16, %18 : vector<24x128xf32>
    %c0_20 = arith.constant 0 : index
    %c0_21 = arith.constant 0 : index
    %c0_22 = arith.constant 0 : index
    %20 = vector.load %arg8[%c0_20, %c0_21, %c0_22] : memref<1x24x128xf32, #tpu.memory_space<vmem>>, vector<1x24x128xf32>
    %21 = vector.shape_cast %20 : vector<1x24x128xf32> to vector<24x128xf32>
    %22 = vector.shape_cast %19 : vector<24x128xf32> to vector<1x24x128xf32>
    tpu.vector_store %arg8[%c0_20, %c0_21, %c0_22], %22 {strides = array<i32>} : memref<1x24x128xf32, #tpu.memory_space<vmem>>, vector<1x24x128xf32>,
    return
  }
  func.func @transform_0(%arg0: i32, %arg1: i32) -> (i32, i32, i32) {
    %c0_i32 = arith.constant 0 : i32
    %c0_i32_0 = arith.constant 0 : i32
    return %arg0, %arg1, %c0_i32 : i32, i32, i32
  }
  func.func @transform_1(%arg0: i32, %arg1: i32) -> (i32, i32) {
    %c0_i32 = arith.constant 0 : i32
    %c0_i32_0 = arith.constant 0 : i32
    %c0_i32_1 = arith.constant 0 : i32
    return %c0_i32, %c0_i32_0 : i32, i32
  }
  func.func @transform_2(%arg0: i32, %arg1: i32) -> (i32, i32) {
    %c0_i32 = arith.constant 0 : i32
    %c0_i32_0 = arith.constant 0 : i32
    %c0_i32_1 = arith.constant 0 : i32
    return %c0_i32, %c0_i32_0 : i32, i32
  }
  func.func @transform_3(%arg0: i32, %arg1: i32) -> (i32, i32) {
    %c0_i32 = arith.constant 0 : i32
    %c0_i32_0 = arith.constant 0 : i32
    %c0_i32_1 = arith.constant 0 : i32
    return %c0_i32, %c0_i32_0 : i32, i32
  }
  func.func @transform_4(%arg0: i32, %arg1: i32) -> (i32, i32) {
    %c0_i32 = arith.constant 0 : i32
    %c0_i32_0 = arith.constant 0 : i32
    %c0_i32_1 = arith.constant 0 : i32
    return %c0_i32, %c0_i32_0 : i32, i32
  }
  func.func @transform_5(%arg0: i32, %arg1: i32) -> (i32, i32) {
    %c0_i32 = arith.constant 0 : i32
    %c0_i32_0 = arith.constant 0 : i32
    %c0_i32_1 = arith.constant 0 : i32
    return %c0_i32, %c0_i32_0 : i32, i32
  }
  func.func @transform_6(%arg0: i32, %arg1: i32) -> (i32, i32, i32) {
    %c0_i32 = arith.constant 0 : i32
    %c0_i32_0 = arith.constant 0 : i32
    return %arg0, %arg1, %c0_i32 : i32, i32, i32
  }
}

module attributes {stable_mosaic.version = 11 : i64} {
  func.func @lstm_kernel(%arg0: i32, %arg1: i32, %arg2: memref<1x24x16xbf16, #tpu.memory_space<vmem>>, %arg3: memref<16x512xbf16, #tpu.memory_space<vmem>>, %arg4: memref<128x512xbf16, #tpu.memory_space<vmem>>, %arg5: memref<1x512xf32, #tpu.memory_space<vmem>>, %arg6: memref<128x128xbf16, #tpu.memory_space<vmem>>, %arg7: memref<1x128xf32, #tpu.memory_space<vmem>>, %arg8: memref<1x24x128xf32, #tpu.memory_space<vmem>>, %arg9: memref<8x128xf32, #tpu.memory_space<vmem>>, %arg10: memref<8x128xf32, #tpu.memory_space<vmem>>, %arg11: memref<24x512xf32, #tpu.memory_space<vmem>>, %arg12: memref<24x128xf32, #tpu.memory_space<vmem>>) attributes {dimension_semantics = [#tpu.dimension_semantics<parallel>, #tpu.dimension_semantics<arbitrary>], iteration_bounds = array<i64: 1, 1>, scalar_prefetch = 0 : i64, scratch_operands = 4 : i64, tpu.core_type = #tpu.core_type<tc>, window_params = [{transform_indices = @transform_0, window_bounds = array<i64: 1, 24, 16>}, {pipeline_mode = #tpu.pipeline_mode<synchronous>, transform_indices = @transform_1, window_bounds = array<i64: 16, 512>}, {pipeline_mode = #tpu.pipeline_mode<synchronous>, transform_indices = @transform_2, window_bounds = array<i64: 128, 512>}, {pipeline_mode = #tpu.pipeline_mode<synchronous>, transform_indices = @transform_3, window_bounds = array<i64: 1, 512>}, {pipeline_mode = #tpu.pipeline_mode<synchronous>, transform_indices = @transform_4, window_bounds = array<i64: 128, 128>}, {pipeline_mode = #tpu.pipeline_mode<synchronous>, transform_indices = @transform_5, window_bounds = array<i64: 1, 128>}, {transform_indices = @transform_6, window_bounds = array<i64: 1, 24, 128>}]} {
    %c0_i32 = arith.constant 0 : i32
    %0 = arith.cmpi eq, %arg1, %c0_i32 : i32
    %1 = arith.extui %0 : i1 to i32
    %c0_i32_0 = arith.constant 0 : i32
    %2 = arith.cmpi ne, %1, %c0_i32_0 : i32
    scf.if %2 {
      %cst_23 = arith.constant 0.000000e+00 : f32
      %23 = vector.broadcast %cst_23 : f32 to vector<8x128xf32>
      %c0_24 = arith.constant 0 : index
      %c0_25 = arith.constant 0 : index
      %24 = vector.load %arg9[%c0_24, %c0_25] : memref<8x128xf32, #tpu.memory_space<vmem>>, vector<8x128xf32>
      tpu.vector_store %arg9[%c0_24, %c0_25], %23 {strides = array<i32>} : memref<8x128xf32, #tpu.memory_space<vmem>>, vector<8x128xf32>,
      %cst_26 = arith.constant 0.000000e+00 : f32
      %25 = vector.broadcast %cst_26 : f32 to vector<8x128xf32>
      %c0_27 = arith.constant 0 : index
      %c0_28 = arith.constant 0 : index
      %26 = vector.load %arg10[%c0_27, %c0_28] : memref<8x128xf32, #tpu.memory_space<vmem>>, vector<8x128xf32>
      tpu.vector_store %arg10[%c0_27, %c0_28], %25 {strides = array<i32>} : memref<8x128xf32, #tpu.memory_space<vmem>>, vector<8x128xf32>,
    } else {
    }
    %c0 = arith.constant 0 : index
    %c0_1 = arith.constant 0 : index
    %c0_2 = arith.constant 0 : index
    %3 = vector.load %arg2[%c0, %c0_1, %c0_2] : memref<1x24x16xbf16, #tpu.memory_space<vmem>>, vector<1x24x16xbf16>
    %4 = vector.shape_cast %3 : vector<1x24x16xbf16> to vector<24x16xbf16>
    %c0_3 = arith.constant 0 : index
    %c0_4 = arith.constant 0 : index
    %5 = vector.load %arg3[%c0_3, %c0_4] : memref<16x512xbf16, #tpu.memory_space<vmem>>, vector<16x512xbf16>
    %cst = arith.constant dense<0.000000e+00> : vector<24x512xf32>
    %6 = tpu.matmul %4, %5, %cst {dimension_numbers = #tpu.dot_dimension_numbers<[1], [0], [0], [1], [0, 0, 1, 1], [], []>} : vector<24x16xbf16>, vector<16x512xbf16>, vector<24x512xf32> -> vector<24x512xf32>
    %c0_5 = arith.constant 0 : index
    %c0_6 = arith.constant 0 : index
    %7 = vector.load %arg5[%c0_5, %c0_6] : memref<1x512xf32, #tpu.memory_space<vmem>>, vector<1x512xf32>
    %8 = vector.broadcast %7 : vector<1x512xf32> to vector<24x512xf32>
    %9 = arith.addf %6, %8 : vector<24x512xf32>
    %c0_7 = arith.constant 0 : index
    %c0_8 = arith.constant 0 : index
    %10 = vector.load %arg11[%c0_7, %c0_8] : memref<24x512xf32, #tpu.memory_space<vmem>>, vector<24x512xf32>
    tpu.vector_store %arg11[%c0_7, %c0_8], %9 {strides = array<i32>} : memref<24x512xf32, #tpu.memory_space<vmem>>, vector<24x512xf32>,
    %c0_9 = arith.constant 0 : index
    %c0_10 = arith.constant 0 : index
    %11 = vector.load %arg4[%c0_9, %c0_10] : memref<128x512xbf16, #tpu.memory_space<vmem>>, vector<128x512xbf16>
    %c0_i32_11 = arith.constant 0 : i32
    %c3_i32 = arith.constant 3 : i32
    %12 = arith.addi %c0_i32_11, %c3_i32 : i32
    %c1_i32 = arith.constant 1 : i32
    scf.for %arg13 = %c0_i32_11 to %12 step %c1_i32  : i32 {
      %c8_i32 = arith.constant 8 : i32
      %23 = arith.muli %arg13, %c8_i32 : i32
      %24 = tpu.assume_multiple %23, 8 : i32
      %c0_23 = arith.constant 0 : index
      %c0_24 = arith.constant 0 : index
      %25 = vector.load %arg9[%c0_23, %c0_24] : memref<8x128xf32, #tpu.memory_space<vmem>>, vector<8x128xf32>
      %c0_25 = arith.constant 0 : index
      %c0_26 = arith.constant 0 : index
      %26 = vector.load %arg10[%c0_25, %c0_26] : memref<8x128xf32, #tpu.memory_space<vmem>>, vector<8x128xf32>
      %27 = arith.index_cast %24 : i32 to index
      %c0_27 = arith.constant 0 : index
      %28 = vector.load %arg11[%27, %c0_27] : memref<24x512xf32, #tpu.memory_space<vmem>>, vector<8x512xf32>
      %29 = arith.truncf %25 : vector<8x128xf32> to vector<8x128xbf16>
      %cst_28 = arith.constant dense<0.000000e+00> : vector<8x512xf32>
      %30 = tpu.matmul %29, %11, %cst_28 {dimension_numbers = #tpu.dot_dimension_numbers<[1], [0], [0], [1], [0, 0, 1, 1], [], []>} : vector<8x128xbf16>, vector<128x512xbf16>, vector<8x512xf32> -> vector<8x512xf32>
      %31 = arith.addf %28, %30 : vector<8x512xf32>
      %32 = vector.extract_strided_slice %31 {offsets = [0, 0], sizes = [8, 128], strides = [1, 1]} : vector<8x512xf32> to vector<8x128xf32>
      %33 = arith.negf %32 : vector<8x128xf32>
      %34 = math.exp %33 : vector<8x128xf32>
      %cst_29 = arith.constant 1.000000e+00 : f32
      %35 = vector.broadcast %cst_29 : f32 to vector<8x128xf32>
      %36 = arith.addf %35, %34 : vector<8x128xf32>
      %37 = arith.divf %35, %36 : vector<8x128xf32>
      %38 = vector.extract_strided_slice %31 {offsets = [0, 128], sizes = [8, 128], strides = [1, 1]} : vector<8x512xf32> to vector<8x128xf32>
      %39 = arith.negf %38 : vector<8x128xf32>
      %40 = math.exp %39 : vector<8x128xf32>
      %cst_30 = arith.constant 1.000000e+00 : f32
      %41 = vector.broadcast %cst_30 : f32 to vector<8x128xf32>
      %42 = arith.addf %41, %40 : vector<8x128xf32>
      %43 = arith.divf %41, %42 : vector<8x128xf32>
      %44 = vector.extract_strided_slice %31 {offsets = [0, 256], sizes = [8, 128], strides = [1, 1]} : vector<8x512xf32> to vector<8x128xf32>
      %45 = math.tanh %44 : vector<8x128xf32>
      %46 = vector.extract_strided_slice %31 {offsets = [0, 384], sizes = [8, 128], strides = [1, 1]} : vector<8x512xf32> to vector<8x128xf32>
      %47 = arith.negf %46 : vector<8x128xf32>
      %48 = math.exp %47 : vector<8x128xf32>
      %cst_31 = arith.constant 1.000000e+00 : f32
      %49 = vector.broadcast %cst_31 : f32 to vector<8x128xf32>
      %50 = arith.addf %49, %48 : vector<8x128xf32>
      %51 = arith.divf %49, %50 : vector<8x128xf32>
      %52 = arith.mulf %37, %26 : vector<8x128xf32>
      %53 = arith.mulf %43, %45 : vector<8x128xf32>
      %54 = arith.addf %52, %53 : vector<8x128xf32>
      %55 = math.tanh %54 : vector<8x128xf32>
      %56 = arith.mulf %51, %55 : vector<8x128xf32>
      %c0_32 = arith.constant 0 : index
      %c0_33 = arith.constant 0 : index
      %57 = vector.load %arg10[%c0_32, %c0_33] : memref<8x128xf32, #tpu.memory_space<vmem>>, vector<8x128xf32>
      tpu.vector_store %arg10[%c0_32, %c0_33], %54 {strides = array<i32>} : memref<8x128xf32, #tpu.memory_space<vmem>>, vector<8x128xf32>,
      %c0_34 = arith.constant 0 : index
      %c0_35 = arith.constant 0 : index
      %58 = vector.load %arg9[%c0_34, %c0_35] : memref<8x128xf32, #tpu.memory_space<vmem>>, vector<8x128xf32>
      tpu.vector_store %arg9[%c0_34, %c0_35], %56 {strides = array<i32>} : memref<8x128xf32, #tpu.memory_space<vmem>>, vector<8x128xf32>,
      %59 = arith.index_cast %24 : i32 to index
      %c0_36 = arith.constant 0 : index
      %60 = vector.load %arg12[%59, %c0_36] : memref<24x128xf32, #tpu.memory_space<vmem>>, vector<8x128xf32>
      tpu.vector_store %arg12[%59, %c0_36], %56 {strides = array<i32>} : memref<24x128xf32, #tpu.memory_space<vmem>>, vector<8x128xf32>,
    }
    %c3_i32_12 = arith.constant 3 : i32
    %c0_13 = arith.constant 0 : index
    %c0_14 = arith.constant 0 : index
    %13 = vector.load %arg12[%c0_13, %c0_14] : memref<24x128xf32, #tpu.memory_space<vmem>>, vector<24x128xf32>
    %14 = arith.truncf %13 : vector<24x128xf32> to vector<24x128xbf16>
    %c0_15 = arith.constant 0 : index
    %c0_16 = arith.constant 0 : index
    %15 = vector.load %arg6[%c0_15, %c0_16] : memref<128x128xbf16, #tpu.memory_space<vmem>>, vector<128x128xbf16>
    %cst_17 = arith.constant dense<0.000000e+00> : vector<24x128xf32>
    %16 = tpu.matmul %14, %15, %cst_17 {dimension_numbers = #tpu.dot_dimension_numbers<[1], [0], [0], [1], [0, 0, 1, 1], [], []>} : vector<24x128xbf16>, vector<128x128xbf16>, vector<24x128xf32> -> vector<24x128xf32>
    %c0_18 = arith.constant 0 : index
    %c0_19 = arith.constant 0 : index
    %17 = vector.load %arg7[%c0_18, %c0_19] : memref<1x128xf32, #tpu.memory_space<vmem>>, vector<1x128xf32>
    %18 = vector.broadcast %17 : vector<1x128xf32> to vector<24x128xf32>
    %19 = arith.addf %16, %18 : vector<24x128xf32>
    %c0_20 = arith.constant 0 : index
    %c0_21 = arith.constant 0 : index
    %c0_22 = arith.constant 0 : index
    %20 = vector.load %arg8[%c0_20, %c0_21, %c0_22] : memref<1x24x128xf32, #tpu.memory_space<vmem>>, vector<1x24x128xf32>
    %21 = vector.shape_cast %20 : vector<1x24x128xf32> to vector<24x128xf32>
    %22 = vector.shape_cast %19 : vector<24x128xf32> to vector<1x24x128xf32>
    tpu.vector_store %arg8[%c0_20, %c0_21, %c0_22], %22 {strides = array<i32>} : memref<1x24x128xf32, #tpu.memory_space<vmem>>, vector<1x24x128xf32>,
    return
  }
  func.func @transform_0(%arg0: i32, %arg1: i32) -> (i32, i32, i32) {
    %c0_i32 = arith.constant 0 : i32
    %c0_i32_0 = arith.constant 0 : i32
    return %arg0, %arg1, %c0_i32 : i32, i32, i32
  }
  func.func @transform_1(%arg0: i32, %arg1: i32) -> (i32, i32) {
    %c0_i32 = arith.constant 0 : i32
    %c0_i32_0 = arith.constant 0 : i32
    %c0_i32_1 = arith.constant 0 : i32
    return %c0_i32, %c0_i32_0 : i32, i32
  }
  func.func @transform_2(%arg0: i32, %arg1: i32) -> (i32, i32) {
    %c0_i32 = arith.constant 0 : i32
    %c0_i32_0 = arith.constant 0 : i32
    %c0_i32_1 = arith.constant 0 : i32
    return %c0_i32, %c0_i32_0 : i32, i32
  }
  func.func @transform_3(%arg0: i32, %arg1: i32) -> (i32, i32) {
    %c0_i32 = arith.constant 0 : i32
    %c0_i32_0 = arith.constant 0 : i32
    %c0_i32_1 = arith.constant 0 : i32
    return %c0_i32, %c0_i32_0 : i32, i32
  }
  func.func @transform_4(%arg0: i32, %arg1: i32) -> (i32, i32) {
    %c0_i32 = arith.constant 0 : i32
    %c0_i32_0 = arith.constant 0 : i32
    %c0_i32_1 = arith.constant 0 : i32
    return %c0_i32, %c0_i32_0 : i32, i32
  }
  func.func @transform_5(%arg0: i32, %arg1: i32) -> (i32, i32) {
    %c0_i32 = arith.constant 0 : i32
    %c0_i32_0 = arith.constant 0 : i32
    %c0_i32_1 = arith.constant 0 : i32
    return %c0_i32, %c0_i32_0 : i32, i32
  }
  func.func @transform_6(%arg0: i32, %arg1: i32) -> (i32, i32, i32) {
    %c0_i32 = arith.constant 0 : i32
    %c0_i32_0 = arith.constant 0 : i32
    return %arg0, %arg1, %c0_i32 : i32, i32, i32
  }
}

</mosaic_0001>

<llo_original>
// kernel: tpu_custom_call.1
$region0: #{tpu_custom_call.1}
  #allocation0 [shape = 'u32[]', space=smem, size = 0x4, offset = 0x4, fixed_abs, tag = 'smem constant byte address 0x4 - core index']
  #allocation1 [shape = 'u32[144,128]{1,0:T(1,128)}', space=vmem, size = 0x12000, scoped, tag = 'internal scratch']
  #allocation2 [shape = 'f32[8,128]{1,0:T(8,128)}', space=vmem, size = 0x1000, scoped, tag = 'scratch operand']
  #allocation3 [shape = 'f32[8,128]{1,0:T(8,128)}', space=vmem, size = 0x1000, scoped, tag = 'scratch operand']
  #allocation4 [shape = 'f32[24,512]{1,0:T(8,128)}', space=vmem, size = 0xc000, scoped, tag = 'scratch operand']
  #allocation5 [shape = 'f32[24,128]{1,0:T(8,128)}', space=vmem, size = 0x3000, scoped, tag = 'scratch operand']
  %s0 = inlined_call_operand.vmem [shape: bf16[1,24,16], index: 0, kind: input, shape index: {}]
  %s1 = inlined_call_operand.hbm [shape: bf16[16,512], index: 1, kind: input, shape index: {}]
  %s2 = inlined_call_operand.hbm [shape: bf16[128,512], index: 2, kind: input, shape index: {}]
  %s3 = inlined_call_operand.vmem [shape: f32[1,512], index: 3, kind: input, shape index: {}]
  %s4 = inlined_call_operand.hbm [shape: bf16[128,128], index: 4, kind: input, shape index: {}]
  %s5 = inlined_call_operand.vmem [shape: f32[1,128], index: 5, kind: input, shape index: {}]
  %s6 = inlined_call_operand.hbm [shape: f32[1,24,128], index: 6, kind: output, shape index: {}]
  %s7 = sld [smem:[#allocation0]]
  $region57: #{tpu_custom_call.1} parent=0
    _
  %s9 = ssub.s32 1, %s7
  %s10 = scalar_select 0, %s9, %s7
  $region1: #{tpu_custom_call.1} parent=0
    #allocation6 [shape = 'u8[16384]{0}', space=vmem, size = 0x4000, scoped, tag = 'input window, operand 1, single buffered']
    #allocation7 [shape = 's32[1]{0}', space=sflag, size = 0x4, scoped, tag = 'scoped memory for tpu_custom_call.1']
    #allocation8 [shape = 's32[1]{0}', space=sflag, size = 0x4, scoped, tag = 'scoped memory for tpu_custom_call.1']
    #allocation9 [shape = 'u8[131072]{0}', space=vmem, size = 0x20000, scoped, tag = 'input window, operand 2, single buffered']
    #allocation10 [shape = 's32[1]{0}', space=sflag, size = 0x4, scoped, tag = 'scoped memory for tpu_custom_call.1']
    #allocation11 [shape = 'u8[32768]{0}', space=vmem, size = 0x8000, scoped, tag = 'input window, operand 4, single buffered']
    #allocation12 [shape = 'u8[12288]{0}', space=vmem, size = 0x3000, scoped, tag = 'output window, operand 0, single buffered']
    %11 = vsyncpa [#allocation7], 0
    %12 = vsyncpa [#allocation10], 0
    %13 = vsyncpa [#allocation8], 0
    // Predicated region
    $region2: #{tpu_custom_call.1} parent=1 // pred_check
      _
    $region3: #{tpu_custom_call.1} parent=1 // pred_check_branch
      %15 = sbr.rel (0) target = $region5
    $region4: #{tpu_custom_call.1} parent=1 // pred_region
      _
    $region5: #{tpu_custom_call.1} parent=1 // pred_fallthru
      _
    // Predicated region
    $region6: #{tpu_custom_call.1} parent=1 // pred_check
      _
    $region7: #{tpu_custom_call.1} parent=1 // pred_check_branch
      %17 = sbr.rel (0) target = $region9
    $region8: #{tpu_custom_call.1} parent=1 // pred_region
      %s19 = ssub.s32 512, 512
      %20 = vsyncadd [#allocation7], %s19
      %s21 = sshll.u32 [#allocation6], 4
      %s22 = int_to_ptr.vmem [resolvable:$true] %s21
      %27 = dma.hbm_to_vmem [thread:$0]  %s1, 512, %s22, [#allocation7], 256, 256, 16
    $region9: #{tpu_custom_call.1} parent=1 // pred_fallthru
      _
    // Predicated region
    $region10: #{tpu_custom_call.1} parent=1 // pred_check
      _
    $region11: #{tpu_custom_call.1} parent=1 // pred_check_branch
      %29 = sbr.rel (0) target = $region13
    $region12: #{tpu_custom_call.1} parent=1 // pred_region
      %s31 = ssub.s32 4096, 4096
      %32 = vsyncadd [#allocation10], %s31
      %s33 = sshll.u32 [#allocation9], 4
      %s34 = int_to_ptr.vmem [resolvable:$true] %s33
      %39 = dma.hbm_to_vmem [thread:$0]  %s2, 4096, %s34, [#allocation10], 256, 256, 16
    $region13: #{tpu_custom_call.1} parent=1 // pred_fallthru
      _
    // Predicated region
    $region14: #{tpu_custom_call.1} parent=1 // pred_check
      _
    $region15: #{tpu_custom_call.1} parent=1 // pred_check_branch
      %41 = sbr.rel (0) target = $region17
    $region16: #{tpu_custom_call.1} parent=1 // pred_region
      _
    $region17: #{tpu_custom_call.1} parent=1 // pred_fallthru
      _
    // Predicated region
    $region18: #{tpu_custom_call.1} parent=1 // pred_check
      _
    $region19: #{tpu_custom_call.1} parent=1 // pred_check_branch
      %43 = sbr.rel (0) target = $region21
    $region20: #{tpu_custom_call.1} parent=1 // pred_region
      %s45 = ssub.s32 1024, 1024
      %46 = vsyncadd [#allocation10], %s45
      %s47 = sshll.u32 [#allocation11], 4
      %s48 = int_to_ptr.vmem [resolvable:$true] %s47
      %53 = dma.hbm_to_vmem [thread:$0]  %s4, 1024, %s48, [#allocation10], 64, 64, 4
    $region21: #{tpu_custom_call.1} parent=1 // pred_fallthru
      _
    // Predicated region
    $region22: #{tpu_custom_call.1} parent=1 // pred_check
      _
    $region23: #{tpu_custom_call.1} parent=1 // pred_check_branch
      %55 = sbr.rel (0) target = $region25
    $region24: #{tpu_custom_call.1} parent=1 // pred_region
      _
    $region25: #{tpu_custom_call.1} parent=1 // pred_fallthru
      _
    // Predicated region
    $region26: #{tpu_custom_call.1} parent=1 // pred_check
      _
    $region27: #{tpu_custom_call.1} parent=1 // pred_check_branch
      %57 = sbr.rel (0) target = $region29
    $region28: #{tpu_custom_call.1} parent=1 // pred_region
      %58 = dma.done [#allocation7], 512
    $region29: #{tpu_custom_call.1} parent=1 // pred_fallthru
      _
    // Predicated region
    $region30: #{tpu_custom_call.1} parent=1 // pred_check
      _
    $region31: #{tpu_custom_call.1} parent=1 // pred_check_branch
      %60 = sbr.rel (0) target = $region33
    $region32: #{tpu_custom_call.1} parent=1 // pred_region
      %61 = dma.done [#allocation10], 4096
    $region33: #{tpu_custom_call.1} parent=1 // pred_fallthru
      _
    // Predicated region
    $region34: #{tpu_custom_call.1} parent=1 // pred_check
      _
    $region35: #{tpu_custom_call.1} parent=1 // pred_check_branch
      %63 = sbr.rel (0) target = $region37
    $region36: #{tpu_custom_call.1} parent=1 // pred_region
      %64 = dma.done [#allocation10], 1024
    $region37: #{tpu_custom_call.1} parent=1 // pred_fallthru
      _
    %p66 = scmp.eq.s32.totalorder 0, 0
    // Predicated region
    $region38: #{tpu_custom_call.1} parent=1 // pred_check
      %p67 = pneg %p66
    $region39: #{tpu_custom_call.1} parent=1 // pred_check_branch
      %69 = sbr.rel (%p67) target = $region41
    $region40: #{tpu_custom_call.1} parent=1 // pred_region
      %70 = vst [vmem:[#allocation2] sm:$0xff] 0.0
      %71 = vst [vmem:[#allocation3] sm:$0xff] 0.0
    $region41: #{tpu_custom_call.1} parent=1 // pred_fallthru
      _
    %v72 = vld [vmem:[%s0] sm:$0xf]
    %v73 = vld [vmem:[%s0 + $0x4] sm:$0xf]
    %v74 = vld [vmem:[%s0 + $0x8] sm:$0xf]
    %v75 = vld [vmem:[#allocation6] sm:$0xff]
    %v76 = vld [vmem:[#allocation6 + $0x8] sm:$0xff]
    %v77 = vld [vmem:[#allocation6 + $0x10] sm:$0xff]
    %v78 = vld [vmem:[#allocation6 + $0x18] sm:$0xff]
    %v79 = vld [vmem:[%s3] sm:$0xf]
    %v81 = vlaneseq
    %v82 = vshrl.u32 %v81, 7
    %v83 = vsub.s32 0, %v82
    %v84 = vrot.slane %v79, %v83
    %v85 = vlaneseq
    %v86 = vshrl.u32 %v85, 7
    %v87 = vsub.s32 1, %v86
    %v88 = vrot.slane %v79, %v87
    %v89 = vlaneseq
    %v90 = vshrl.u32 %v89, 7
    %v91 = vsub.s32 2, %v90
    %v92 = vrot.slane %v79, %v91
    %v93 = vlaneseq
    %v94 = vshrl.u32 %v93, 7
    %v95 = vsub.s32 3, %v94
    %v96 = vrot.slane %v79, %v95
    %v104 = vunpack.c.l.b16 %v72
    %v105 = vunpack.c.l.b16 %v73
    %v106 = vunpack.c.l.b16 %v74
    %v107 = vpack.c.b16 %v105, %v104
    %v108 = vpack.c.b16 %v106, %v106
    %v113 = vunpack.c.l.b16 %v75
    %v114 = vunpack.c.h.b16 %v75
    %v115 = vunpack.c.l.b16 %v76
    %v116 = vunpack.c.h.b16 %v76
    %v117 = vunpack.c.l.b16 %v77
    %v118 = vunpack.c.h.b16 %v77
    %v119 = vunpack.c.l.b16 %v78
    %v120 = vunpack.c.h.b16 %v78
    %v121 = vpack.c.b16 %v117, %v113
    %v122 = vpack.c.b16 %v118, %v114
    %v123 = vpack.c.b16 %v119, %v115
    %v124 = vpack.c.b16 %v120, %v116
    %vm129 = vcmask 130048
    %v131 = vsel %vm129, %v107, 0
    %v134 = vsel %vm129, %v108, 0
    %136 = vmatprep.subr.bf16.mxu0 0
    %137 = vmatpush1.bf16.msra.mxu0 0
    %138 = vmatprep.subr.bf16.mxu0 0
    %139 = vmatpush1.bf16.msra.mxu0 0
    %140 = vmatprep.subr.bf16.mxu0 0
    %141 = vmatpush1.bf16.msra.mxu0 0
    %142 = vmatprep.subr.bf16.mxu0 0
    %143 = vmatpush1.bf16.msra.mxu0 0
    %144 = vmatprep.subr.bf16.mxu0 0
    %145 = vmatpush1.bf16.msra.mxu0 0
    %146 = vmatprep.subr.bf16.mxu0 0
    %147 = vmatpush1.bf16.msra.mxu0 0
    %148 = vmatprep.subr.bf16.mxu0 0
    %149 = vmatpush1.bf16.msra.mxu0 0
    %150 = vmatprep.subr.bf16.mxu0 %v122
    %151 = vmatpush1.bf16.msra.mxu0 %v121
    %152 = vmatprep.subr.bf16.mxu0 0
    %153 = vmatpush2.bf16.msra.mxu0 0
    %154 = vmatprep.subr.bf16.mxu0 0
    %155 = vmatpush2.bf16.msra.mxu0 0
    %156 = vmatprep.subr.bf16.mxu0 0
    %157 = vmatpush2.bf16.msra.mxu0 0
    %158 = vmatprep.subr.bf16.mxu0 0
    %159 = vmatpush2.bf16.msra.mxu0 0
    %160 = vmatprep.subr.bf16.mxu0 0
    %161 = vmatpush2.bf16.msra.mxu0 0
    %162 = vmatprep.subr.bf16.mxu0 0
    %163 = vmatpush2.bf16.msra.mxu0 0
    %164 = vmatprep.subr.bf16.mxu0 0
    %165 = vmatpush2.bf16.msra.mxu0 0
    %166 = vmatprep.subr.bf16.mxu0 0
    %167 = vmatpush2.bf16.msra.mxu0 0
    %168 = vmatprep.mubr.bf16.mxu0 0
    %169 = vmatmul.mubr.bf16.gmra.mxu0 %v131
    %v170 = vpop.f32.mrf.mxu0
    %v171 = vadd.f32 %v84, %v170
    %v172 = vpop.f32.mrf.mxu0
    %v173 = vadd.f32 %v88, %v172
    %v174 = vpop.f32.mrf.mxu0
    %v175 = vadd.f32 %v84, %v174
    %v176 = vpop.f32.mrf.mxu0
    %v177 = vadd.f32 %v88, %v176
    %178 = vmatprep.mubr.bf16.mxu0 0
    %179 = vmatmul.mubr.bf16.gmra.mxu0 %v134
    %v180 = vpop.f32.mrf.mxu0
    %v181 = vadd.f32 %v84, %v180
    %v182 = vpop.f32.mrf.mxu0
    %v183 = vadd.f32 %v88, %v182
    %v184 = vpop.f32.mrf.mxu0
    %v185 = vpop.f32.mrf.mxu0
    %186 = vdwg.mxu0
    %187 = vmatprep.subr.bf16.mxu0 0
    %188 = vmatpush1.bf16.msra.mxu0 0
    %189 = vmatprep.subr.bf16.mxu0 0
    %190 = vmatpush1.bf16.msra.mxu0 0
    %191 = vmatprep.subr.bf16.mxu0 0
    %192 = vmatpush1.bf16.msra.mxu0 0
    %193 = vmatprep.subr.bf16.mxu0 0
    %194 = vmatpush1.bf16.msra.mxu0 0
    %195 = vmatprep.subr.bf16.mxu0 0
    %196 = vmatpush1.bf16.msra.mxu0 0
    %197 = vmatprep.subr.bf16.mxu0 0
    %198 = vmatpush1.bf16.msra.mxu0 0
    %199 = vmatprep.subr.bf16.mxu0 0
    %200 = vmatpush1.bf16.msra.mxu0 0
    %201 = vmatprep.subr.bf16.mxu0 %v124
    %202 = vmatpush1.bf16.msra.mxu0 %v123
    %203 = vmatprep.subr.bf16.mxu0 0
    %204 = vmatpush2.bf16.msra.mxu0 0
    %205 = vmatprep.subr.bf16.mxu0 0
    %206 = vmatpush2.bf16.msra.mxu0 0
    %207 = vmatprep.subr.bf16.mxu0 0
    %208 = vmatpush2.bf16.msra.mxu0 0
    %209 = vmatprep.subr.bf16.mxu0 0
    %210 = vmatpush2.bf16.msra.mxu0 0
    %211 = vmatprep.subr.bf16.mxu0 0
    %212 = vmatpush2.bf16.msra.mxu0 0
    %213 = vmatprep.subr.bf16.mxu0 0
    %214 = vmatpush2.bf16.msra.mxu0 0
    %215 = vmatprep.subr.bf16.mxu0 0
    %216 = vmatpush2.bf16.msra.mxu0 0
    %217 = vmatprep.subr.bf16.mxu0 0
    %218 = vmatpush2.bf16.msra.mxu0 0
    %219 = vmatprep.mubr.bf16.mxu0 0
    %220 = vmatmul.mubr.bf16.gmra.mxu0 %v131
    %v221 = vpop.f32.mrf.mxu0
    %v222 = vadd.f32 %v92, %v221
    %v223 = vpop.f32.mrf.mxu0
    %v224 = vadd.f32 %v96, %v223
    %v225 = vpop.f32.mrf.mxu0
    %v226 = vadd.f32 %v92, %v225
    %v227 = vpop.f32.mrf.mxu0
    %v228 = vadd.f32 %v96, %v227
    %229 = vmatprep.mubr.bf16.mxu0 0
    %230 = vmatmul.mubr.bf16.gmra.mxu0 %v134
    %v231 = vpop.f32.mrf.mxu0
    %v232 = vadd.f32 %v92, %v231
    %v233 = vpop.f32.mrf.mxu0
    %v234 = vadd.f32 %v96, %v233
    %v235 = vpop.f32.mrf.mxu0
    %v236 = vpop.f32.mrf.mxu0
    %237 = vdwg.mxu0
    %238 = vst [vmem:[#allocation4] sm:$0xff] %v171
    %239 = vst [vmem:[#allocation4 + $0x8] sm:$0xff] %v173
    %240 = vst [vmem:[#allocation4 + $0x10] sm:$0xff] %v222
    %241 = vst [vmem:[#allocation4 + $0x18] sm:$0xff] %v224
    %242 = vst [vmem:[#allocation4 + $0x20] sm:$0xff] %v175
    %243 = vst [vmem:[#allocation4 + $0x28] sm:$0xff] %v177
    %244 = vst [vmem:[#allocation4 + $0x30] sm:$0xff] %v226
    %245 = vst [vmem:[#allocation4 + $0x38] sm:$0xff] %v228
    %246 = vst [vmem:[#allocation4 + $0x40] sm:$0xff] %v181
    %247 = vst [vmem:[#allocation4 + $0x48] sm:$0xff] %v183
    %248 = vst [vmem:[#allocation4 + $0x50] sm:$0xff] %v232
    %249 = vst [vmem:[#allocation4 + $0x58] sm:$0xff] %v234
    %v250 = vld [vmem:[#allocation9] sm:$0xff]
    %v251 = vld [vmem:[#allocation9 + $0x8] sm:$0xff]
    %v252 = vld [vmem:[#allocation9 + $0x10] sm:$0xff]
    %v253 = vld [vmem:[#allocation9 + $0x18] sm:$0xff]
    %v254 = vld [vmem:[#allocation9 + $0x20] sm:$0xff]
    %v255 = vld [vmem:[#allocation9 + $0x28] sm:$0xff]
    %v256 = vld [vmem:[#allocation9 + $0x30] sm:$0xff]
    %v257 = vld [vmem:[#allocation9 + $0x38] sm:$0xff]
    %v258 = vld [vmem:[#allocation9 + $0x40] sm:$0xff]
    %v259 = vld [vmem:[#allocation9 + $0x48] sm:$0xff]
    %v260 = vld [vmem:[#allocation9 + $0x50] sm:$0xff]
    %v261 = vld [vmem:[#allocation9 + $0x58] sm:$0xff]
    %v262 = vld [vmem:[#allocation9 + $0x60] sm:$0xff]
    %v263 = vld [vmem:[#allocation9 + $0x68] sm:$0xff]
    %v264 = vld [vmem:[#allocation9 + $0x70] sm:$0xff]
    %v265 = vld [vmem:[#allocation9 + $0x78] sm:$0xff]
    %v266 = vld [vmem:[#allocation9 + $0x80] sm:$0xff]
    %v267 = vld [vmem:[#allocation9 + $0x88] sm:$0xff]
    %v268 = vld [vmem:[#allocation9 + $0x90] sm:$0xff]
    %v269 = vld [vmem:[#allocation9 + $0x98] sm:$0xff]
    %v270 = vld [vmem:[#allocation9 + $0xa0] sm:$0xff]
    %v271 = vld [vmem:[#allocation9 + $0xa8] sm:$0xff]
    %v272 = vld [vmem:[#allocation9 + $0xb0] sm:$0xff]
    %v273 = vld [vmem:[#allocation9 + $0xb8] sm:$0xff]
    %v274 = vld [vmem:[#allocation9 + $0xc0] sm:$0xff]
    %v275 = vld [vmem:[#allocation9 + $0xc8] sm:$0xff]
    %v276 = vld [vmem:[#allocation9 + $0xd0] sm:$0xff]
    %v277 = vld [vmem:[#allocation9 + $0xd8] sm:$0xff]
    %v278 = vld [vmem:[#allocation9 + $0xe0] sm:$0xff]
    %v279 = vld [vmem:[#allocation9 + $0xe8] sm:$0xff]
    %v280 = vld [vmem:[#allocation9 + $0xf0] sm:$0xff]
    %v281 = vld [vmem:[#allocation9 + $0xf8] sm:$0xff]
    loop: start=0, step=1, limit=3
    $region42: #{tpu_custom_call.1} parent=1 // loop_pre_header
      _
    $region43: #{tpu_custom_call.1} parent=1 // loop_header
      %s283 = sphi 0, %s287
      %p284 = scmp.ge.s32.totalorder %s283, 3
    $region44: #{tpu_custom_call.1} parent=1 // loop_header_branch
      %286 = sbr.rel (%p284) target = $region48
    $region45: #{tpu_custom_call.1} parent=1 // loop_body
      %s288 = smul.u32 %s283, 8
      %v289 = vld [vmem:[#allocation2] sm:$0xff]
      %v290 = vld [vmem:[#allocation3] sm:$0xff]
      %s291 = sshra.s32 %s288, 3
      %s292 = sand.u32 %s288, 7
      %s293 = smul.u32 %s291, 4
      %s294 = smul.addr %s293, 8
      %s295 = scalar_lea.vmem [#allocation4], %s294
      %v296 = vld [vmem:[%s295] sm:$0xff]
      %v297 = vld [vmem:[%s295 + $0x8] sm:$0xff]
      %v298 = vld [vmem:[%s295 + $0x10] sm:$0xff]
      %v299 = vld [vmem:[%s295 + $0x18] sm:$0xff]
      %v300 = vpack.c.bf16 %v289, %v289
      %v333 = vunpack.c.l.b16 %v250
      %v334 = vunpack.c.h.b16 %v250
      %v335 = vunpack.c.l.b16 %v251
      %v336 = vunpack.c.h.b16 %v251
      %v337 = vunpack.c.l.b16 %v252
      %v338 = vunpack.c.h.b16 %v252
      %v339 = vunpack.c.l.b16 %v253
      %v340 = vunpack.c.h.b16 %v253
      %v341 = vunpack.c.l.b16 %v254
      %v342 = vunpack.c.h.b16 %v254
      %v343 = vunpack.c.l.b16 %v255
      %v344 = vunpack.c.h.b16 %v255
      %v345 = vunpack.c.l.b16 %v256
      %v346 = vunpack.c.h.b16 %v256
      %v347 = vunpack.c.l.b16 %v257
      %v348 = vunpack.c.h.b16 %v257
      %v349 = vunpack.c.l.b16 %v258
      %v350 = vunpack.c.h.b16 %v258
      %v351 = vunpack.c.l.b16 %v259
      %v352 = vunpack.c.h.b16 %v259
      %v353 = vunpack.c.l.b16 %v260
      %v354 = vunpack.c.h.b16 %v260
      %v355 = vunpack.c.l.b16 %v261
      %v356 = vunpack.c.h.b16 %v261
      %v357 = vunpack.c.l.b16 %v262
      %v358 = vunpack.c.h.b16 %v262
      %v359 = vunpack.c.l.b16 %v263
      %v360 = vunpack.c.h.b16 %v263
      %v361 = vunpack.c.l.b16 %v264
      %v362 = vunpack.c.h.b16 %v264
      %v363 = vunpack.c.l.b16 %v265
      %v364 = vunpack.c.h.b16 %v265
      %v365 = vunpack.c.l.b16 %v266
      %v366 = vunpack.c.h.b16 %v266
      %v367 = vunpack.c.l.b16 %v267
      %v368 = vunpack.c.h.b16 %v267
      %v369 = vunpack.c.l.b16 %v268
      %v370 = vunpack.c.h.b16 %v268
      %v371 = vunpack.c.l.b16 %v269
      %v372 = vunpack.c.h.b16 %v269
      %v373 = vunpack.c.l.b16 %v270
      %v374 = vunpack.c.h.b16 %v270
      %v375 = vunpack.c.l.b16 %v271
      %v376 = vunpack.c.h.b16 %v271
      %v377 = vunpack.c.l.b16 %v272
      %v378 = vunpack.c.h.b16 %v272
      %v379 = vunpack.c.l.b16 %v273
      %v380 = vunpack.c.h.b16 %v273
      %v381 = vunpack.c.l.b16 %v274
      %v382 = vunpack.c.h.b16 %v274
      %v383 = vunpack.c.l.b16 %v275
      %v384 = vunpack.c.h.b16 %v275
      %v385 = vunpack.c.l.b16 %v276
      %v386 = vunpack.c.h.b16 %v276
      %v387 = vunpack.c.l.b16 %v277
      %v388 = vunpack.c.h.b16 %v277
      %v389 = vunpack.c.l.b16 %v278
      %v390 = vunpack.c.h.b16 %v278
      %v391 = vunpack.c.l.b16 %v279
      %v392 = vunpack.c.h.b16 %v279
      %v393 = vunpack.c.l.b16 %v280
      %v394 = vunpack.c.h.b16 %v280
      %v395 = vunpack.c.l.b16 %v281
      %v396 = vunpack.c.h.b16 %v281
      %v397 = vpack.c.b16 %v337, %v333
      %v398 = vpack.c.b16 %v338, %v334
      %v399 = vpack.c.b16 %v339, %v335
      %v400 = vpack.c.b16 %v340, %v336
      %v401 = vpack.c.b16 %v345, %v341
      %v402 = vpack.c.b16 %v346, %v342
      %v403 = vpack.c.b16 %v347, %v343
      %v404 = vpack.c.b16 %v348, %v344
      %v405 = vpack.c.b16 %v353, %v349
      %v406 = vpack.c.b16 %v354, %v350
      %v407 = vpack.c.b16 %v355, %v351
      %v408 = vpack.c.b16 %v356, %v352
      %v409 = vpack.c.b16 %v361, %v357
      %v410 = vpack.c.b16 %v362, %v358
      %v411 = vpack.c.b16 %v363, %v359
      %v412 = vpack.c.b16 %v364, %v360
      %v413 = vpack.c.b16 %v369, %v365
      %v414 = vpack.c.b16 %v370, %v366
      %v415 = vpack.c.b16 %v371, %v367
      %v416 = vpack.c.b16 %v372, %v368
      %v417 = vpack.c.b16 %v377, %v373
      %v418 = vpack.c.b16 %v378, %v374
      %v419 = vpack.c.b16 %v379, %v375
      %v420 = vpack.c.b16 %v380, %v376
      %v421 = vpack.c.b16 %v385, %v381
      %v422 = vpack.c.b16 %v386, %v382
      %v423 = vpack.c.b16 %v387, %v383
      %v424 = vpack.c.b16 %v388, %v384
      %v425 = vpack.c.b16 %v393, %v389
      %v426 = vpack.c.b16 %v394, %v390
      %v427 = vpack.c.b16 %v395, %v391
      %v428 = vpack.c.b16 %v396, %v392
      %461 = vmatprep.subr.bf16.mxu0 %v426
      %462 = vmatpush1.bf16.msra.mxu0 %v425
      %463 = vmatprep.subr.bf16.mxu0 %v422
      %464 = vmatpush1.bf16.msra.mxu0 %v421
      %465 = vmatprep.subr.bf16.mxu0 %v418
      %466 = vmatpush1.bf16.msra.mxu0 %v417
      %467 = vmatprep.subr.bf16.mxu0 %v414
      %468 = vmatpush1.bf16.msra.mxu0 %v413
      %469 = vmatprep.subr.bf16.mxu0 %v410
      %470 = vmatpush1.bf16.msra.mxu0 %v409
      %471 = vmatprep.subr.bf16.mxu0 %v406
      %472 = vmatpush1.bf16.msra.mxu0 %v405
      %473 = vmatprep.subr.bf16.mxu0 %v402
      %474 = vmatpush1.bf16.msra.mxu0 %v401
      %475 = vmatprep.subr.bf16.mxu0 %v398
      %476 = vmatpush1.bf16.msra.mxu0 %v397
      %477 = vmatprep.subr.bf16.mxu0 0
      %478 = vmatpush2.bf16.msra.mxu0 0
      %479 = vmatprep.subr.bf16.mxu0 0
      %480 = vmatpush2.bf16.msra.mxu0 0
      %481 = vmatprep.subr.bf16.mxu0 0
      %482 = vmatpush2.bf16.msra.mxu0 0
      %483 = vmatprep.subr.bf16.mxu0 0
      %484 = vmatpush2.bf16.msra.mxu0 0
      %485 = vmatprep.subr.bf16.mxu0 0
      %486 = vmatpush2.bf16.msra.mxu0 0
      %487 = vmatprep.subr.bf16.mxu0 0
      %488 = vmatpush2.bf16.msra.mxu0 0
      %489 = vmatprep.subr.bf16.mxu0 0
      %490 = vmatpush2.bf16.msra.mxu0 0
      %491 = vmatprep.subr.bf16.mxu0 0
      %492 = vmatpush2.bf16.msra.mxu0 0
      %493 = vmatprep.mubr.bf16.mxu0 0
      %494 = vmatmul.mubr.bf16.gmra.mxu0 %v300
      %v495 = vpop.f32.mrf.mxu0
      %v496 = vadd.f32 0.0, %v495
      %v497 = vpop.f32.mrf.mxu0
      %v498 = vadd.f32 0.0, %v497
      %v499 = vpop.f32.mrf.mxu0
      %v500 = vpop.f32.mrf.mxu0
      %501 = vdwg.mxu0
      %502 = vmatprep.subr.bf16.mxu0 %v428
      %503 = vmatpush1.bf16.msra.mxu0 %v427
      %504 = vmatprep.subr.bf16.mxu0 %v424
      %505 = vmatpush1.bf16.msra.mxu0 %v423
      %506 = vmatprep.subr.bf16.mxu0 %v420
      %507 = vmatpush1.bf16.msra.mxu0 %v419
      %508 = vmatprep.subr.bf16.mxu0 %v416
      %509 = vmatpush1.bf16.msra.mxu0 %v415
      %510 = vmatprep.subr.bf16.mxu0 %v412
      %511 = vmatpush1.bf16.msra.mxu0 %v411
      %512 = vmatprep.subr.bf16.mxu0 %v408
      %513 = vmatpush1.bf16.msra.mxu0 %v407
      %514 = vmatprep.subr.bf16.mxu0 %v404
      %515 = vmatpush1.bf16.msra.mxu0 %v403
      %516 = vmatprep.subr.bf16.mxu0 %v400
      %517 = vmatpush1.bf16.msra.mxu0 %v399
      %518 = vmatprep.subr.bf16.mxu0 0
      %519 = vmatpush2.bf16.msra.mxu0 0
      %520 = vmatprep.subr.bf16.mxu0 0
      %521 = vmatpush2.bf16.msra.mxu0 0
      %522 = vmatprep.subr.bf16.mxu0 0
      %523 = vmatpush2.bf16.msra.mxu0 0
      %524 = vmatprep.subr.bf16.mxu0 0
      %525 = vmatpush2.bf16.msra.mxu0 0
      %526 = vmatprep.subr.bf16.mxu0 0
      %527 = vmatpush2.bf16.msra.mxu0 0
      %528 = vmatprep.subr.bf16.mxu0 0
      %529 = vmatpush2.bf16.msra.mxu0 0
      %530 = vmatprep.subr.bf16.mxu0 0
      %531 = vmatpush2.bf16.msra.mxu0 0
      %532 = vmatprep.subr.bf16.mxu0 0
      %533 = vmatpush2.bf16.msra.mxu0 0
      %534 = vmatprep.mubr.bf16.mxu0 0
      %535 = vmatmul.mubr.bf16.gmra.mxu0 %v300
      %v536 = vpop.f32.mrf.mxu0
      %v537 = vadd.f32 0.0, %v536
      %v538 = vpop.f32.mrf.mxu0
      %v539 = vadd.f32 0.0, %v538
      %v540 = vpop.f32.mrf.mxu0
      %v541 = vpop.f32.mrf.mxu0
      %542 = vdwg.mxu0
      %v543 = vadd.f32 %v296, %v496
      %v544 = vadd.f32 %v297, %v498
      %v545 = vadd.f32 %v298, %v537
      %v546 = vadd.f32 %v299, %v539
      %v547 = vxor.u32 %v543, 2147483648
      %v548 = vmul.f32 %v547, 1.442695
      %v549 = vpow.pop %v548
      %v550 = vadd.f32 %v549, 1.0
      %v551 = vrcp.pop %v550
      %v552 = vmul.f32 1.0, %v551
      %v553 = vxor.u32 %v544, 2147483648
      %v554 = vmul.f32 %v553, 1.442695
      %v555 = vpow.pop %v554
      %v556 = vadd.f32 %v555, 1.0
      %v557 = vrcp.pop %v556
      %v558 = vmul.f32 1.0, %v557
      %v559 = vtanh.pop %v545
      %v560 = vxor.u32 %v546, 2147483648
      %v561 = vmul.f32 %v560, 1.442695
      %v562 = vpow.pop %v561
      %v563 = vadd.f32 %v562, 1.0
      %v564 = vrcp.pop %v563
      %v565 = vmul.f32 1.0, %v564
      %v566 = vmul.f32 %v552, %v290
      %v567 = vmul.f32 %v558, %v559
      %v568 = vadd.f32 %v566, %v567
      %v569 = vtanh.pop %v568
      %v570 = vmul.f32 %v565, %v569
      %571 = vst [vmem:[#allocation3] sm:$0xff] %v568
      %572 = vst [vmem:[#allocation2] sm:$0xff] %v570
      %s573 = scalar_lea.vmem [#allocation5], %s288
      %574 = vst [vmem:[%s573] sm:$0xff] %v570
    $region46: #{tpu_custom_call.1} parent=1 // loop_footer
      %s287 = sadd.s32 1, %s283
    $region47: #{tpu_custom_call.1} parent=1 // loop_footer_branch
      %282 = sbr.rel target = $region43
    $region48: #{tpu_custom_call.1} parent=1 // loop_exit
      _
    %v575 = vld [vmem:[#allocation5] sm:$0xff]
    %v576 = vld [vmem:[#allocation5 + $0x8] sm:$0xff]
    %v577 = vld [vmem:[#allocation5 + $0x10] sm:$0xff]
    %v578 = vpack.c.bf16 %v576, %v575
    %v579 = vpack.c.bf16 %v577, %v577
    %v580 = vld [vmem:[#allocation11] sm:$0xf]
    %v581 = vld [vmem:[#allocation11 + $0x4] sm:$0xf]
    %v582 = vld [vmem:[#allocation11 + $0x8] sm:$0xf]
    %v583 = vld [vmem:[#allocation11 + $0xc] sm:$0xf]
    %v584 = vld [vmem:[#allocation11 + $0x10] sm:$0xf]
    %v585 = vld [vmem:[#allocation11 + $0x14] sm:$0xf]
    %v586 = vld [vmem:[#allocation11 + $0x18] sm:$0xf]
    %v587 = vld [vmem:[#allocation11 + $0x1c] sm:$0xf]
    %v588 = vld [vmem:[#allocation11 + $0x20] sm:$0xf]
    %v589 = vld [vmem:[#allocation11 + $0x24] sm:$0xf]
    %v590 = vld [vmem:[#allocation11 + $0x28] sm:$0xf]
    %v591 = vld [vmem:[#allocation11 + $0x2c] sm:$0xf]
    %v592 = vld [vmem:[#allocation11 + $0x30] sm:$0xf]
    %v593 = vld [vmem:[#allocation11 + $0x34] sm:$0xf]
    %v594 = vld [vmem:[#allocation11 + $0x38] sm:$0xf]
    %v595 = vld [vmem:[#allocation11 + $0x3c] sm:$0xf]
    %v596 = vld [vmem:[%s5] sm:$0x1]
    %v598 = vlaneseq
    %v599 = vshrl.u32 %v598, 7
    %v600 = vsub.s32 0, %v599
    %v601 = vrot.slane %v596, %v600
    %v619 = vunpack.c.l.b16 %v580
    %v620 = vunpack.c.l.b16 %v581
    %v621 = vunpack.c.l.b16 %v582
    %v622 = vunpack.c.l.b16 %v583
    %v623 = vunpack.c.l.b16 %v584
    %v624 = vunpack.c.l.b16 %v585
    %v625 = vunpack.c.l.b16 %v586
    %v626 = vunpack.c.l.b16 %v587
    %v627 = vunpack.c.l.b16 %v588
    %v628 = vunpack.c.l.b16 %v589
    %v629 = vunpack.c.l.b16 %v590
    %v630 = vunpack.c.l.b16 %v591
    %v631 = vunpack.c.l.b16 %v592
    %v632 = vunpack.c.l.b16 %v593
    %v633 = vunpack.c.l.b16 %v594
    %v634 = vunpack.c.l.b16 %v595
    %v635 = vpack.c.b16 %v620, %v619
    %v636 = vpack.c.b16 %v622, %v621
    %v637 = vpack.c.b16 %v624, %v623
    %v638 = vpack.c.b16 %v626, %v625
    %v639 = vpack.c.b16 %v628, %v627
    %v640 = vpack.c.b16 %v630, %v629
    %v641 = vpack.c.b16 %v632, %v631
    %v642 = vpack.c.b16 %v634, %v633
    %651 = vmatprep.subr.bf16.mxu0 0
    %652 = vmatpush1.bf16.msra.mxu0 %v642
    %653 = vmatprep.subr.bf16.mxu0 0
    %654 = vmatpush1.bf16.msra.mxu0 %v641
    %655 = vmatprep.subr.bf16.mxu0 0
    %656 = vmatpush1.bf16.msra.mxu0 %v640
    %657 = vmatprep.subr.bf16.mxu0 0
    %658 = vmatpush1.bf16.msra.mxu0 %v639
    %659 = vmatprep.subr.bf16.mxu0 0
    %660 = vmatpush1.bf16.msra.mxu0 %v638
    %661 = vmatprep.subr.bf16.mxu0 0
    %662 = vmatpush1.bf16.msra.mxu0 %v637
    %663 = vmatprep.subr.bf16.mxu0 0
    %664 = vmatpush1.bf16.msra.mxu0 %v636
    %665 = vmatprep.subr.bf16.mxu0 0
    %666 = vmatpush1.bf16.msra.mxu0 %v635
    %667 = vmatprep.subr.bf16.mxu0 0
    %668 = vmatpush2.bf16.msra.mxu0 0
    %669 = vmatprep.subr.bf16.mxu0 0
    %670 = vmatpush2.bf16.msra.mxu0 0
    %671 = vmatprep.subr.bf16.mxu0 0
    %672 = vmatpush2.bf16.msra.mxu0 0
    %673 = vmatprep.subr.bf16.mxu0 0
    %674 = vmatpush2.bf16.msra.mxu0 0
    %675 = vmatprep.subr.bf16.mxu0 0
    %676 = vmatpush2.bf16.msra.mxu0 0
    %677 = vmatprep.subr.bf16.mxu0 0
    %678 = vmatpush2.bf16.msra.mxu0 0
    %679 = vmatprep.subr.bf16.mxu0 0
    %680 = vmatpush2.bf16.msra.mxu0 0
    %681 = vmatprep.subr.bf16.mxu0 0
    %682 = vmatpush2.bf16.msra.mxu0 0
    %683 = vmatprep.mubr.bf16.mxu0 0
    %684 = vmatmul.mubr.bf16.gmra.mxu0 %v578
    %v685 = vpop.f32.mrf.mxu0
    %v686 = vadd.f32 %v601, %v685
    %v687 = vpop.f32.mrf.mxu0
    %v688 = vpop.f32.mrf.mxu0
    %v689 = vadd.f32 %v601, %v688
    %v690 = vpop.f32.mrf.mxu0
    %691 = vmatprep.mubr.bf16.mxu0 0
    %692 = vmatmul.mubr.bf16.gmra.mxu0 %v579
    %v693 = vpop.f32.mrf.mxu0
    %v694 = vadd.f32 %v601, %v693
    %v695 = vpop.f32.mrf.mxu0
    %v696 = vpop.f32.mrf.mxu0
    %v697 = vpop.f32.mrf.mxu0
    %698 = vdwg.mxu0
    %699 = vst [vmem:[#allocation12] sm:$0xff] %v686
    %700 = vst [vmem:[#allocation12 + $0x8] sm:$0xff] %v689
    %701 = vst [vmem:[#allocation12 + $0x10] sm:$0xff] %v694
    // Predicated region
    $region49: #{tpu_custom_call.1} parent=1 // pred_check
      _
    $region50: #{tpu_custom_call.1} parent=1 // pred_check_branch
      %703 = sbr.rel (0) target = $region52
    $region51: #{tpu_custom_call.1} parent=1 // pred_region
      %s705 = ssub.s32 384, 384
      %706 = vsyncadd [#allocation8], %s705
      %s707 = sshll.u32 [#allocation12], 4
      %s708 = int_to_ptr.vmem [resolvable:$true] %s707
      %713 = dma.vmem_to_hbm [thread:$0]  %s708, 384, %s6, [#allocation8], 128, 128, 8
    $region52: #{tpu_custom_call.1} parent=1 // pred_fallthru
      _
    // Predicated region
    $region53: #{tpu_custom_call.1} parent=1 // pred_check
      _
    $region54: #{tpu_custom_call.1} parent=1 // pred_check_branch
      %715 = sbr.rel (0) target = $region56
    $region55: #{tpu_custom_call.1} parent=1 // pred_region
      %716 = dma.done [#allocation8], 384
    $region56: #{tpu_custom_call.1} parent=1 // pred_fallthru
      _
    %717 = vsyncpa [#allocation7], 1
    %718 = vsyncpa [#allocation10], 1
    %719 = vsyncpa [#allocation8], 1

// kernel: tpu_custom_call.1
$region0: #{tpu_custom_call.1}
  #allocation0 [shape = 'u32[]', space=smem, size = 0x4, offset = 0x4, fixed_abs, tag = 'smem constant byte address 0x4 - core index']
  #allocation1 [shape = 'u32[144,128]{1,0:T(1,128)}', space=vmem, size = 0x12000, scoped, tag = 'internal scratch']
  #allocation2 [shape = 'f32[8,128]{1,0:T(8,128)}', space=vmem, size = 0x1000, scoped, tag = 'scratch operand']
  #allocation3 [shape = 'f32[8,128]{1,0:T(8,128)}', space=vmem, size = 0x1000, scoped, tag = 'scratch operand']
  #allocation4 [shape = 'f32[24,512]{1,0:T(8,128)}', space=vmem, size = 0xc000, scoped, tag = 'scratch operand']
  #allocation5 [shape = 'f32[24,128]{1,0:T(8,128)}', space=vmem, size = 0x3000, scoped, tag = 'scratch operand']
  %s0 = inlined_call_operand.vmem [shape: bf16[1,24,16], index: 0, kind: input, shape index: {}]
  %s1 = inlined_call_operand.hbm [shape: bf16[16,512], index: 1, kind: input, shape index: {}]
  %s2 = inlined_call_operand.hbm [shape: bf16[128,512], index: 2, kind: input, shape index: {}]
  %s3 = inlined_call_operand.vmem [shape: f32[1,512], index: 3, kind: input, shape index: {}]
  %s4 = inlined_call_operand.hbm [shape: bf16[128,128], index: 4, kind: input, shape index: {}]
  %s5 = inlined_call_operand.vmem [shape: f32[1,128], index: 5, kind: input, shape index: {}]
  %s6 = inlined_call_operand.hbm [shape: f32[1,24,128], index: 6, kind: output, shape index: {}]
  %s7 = sld [smem:[#allocation0]]
  $region57: #{tpu_custom_call.1} parent=0
    _
  %s9 = ssub.s32 1, %s7
  %s10 = scalar_select 0, %s9, %s7
  $region1: #{tpu_custom_call.1} parent=0
    #allocation6 [shape = 'u8[16384]{0}', space=vmem, size = 0x4000, scoped, tag = 'input window, operand 1, single buffered']
    #allocation7 [shape = 's32[1]{0}', space=sflag, size = 0x4, scoped, tag = 'scoped memory for tpu_custom_call.1']
    #allocation8 [shape = 's32[1]{0}', space=sflag, size = 0x4, scoped, tag = 'scoped memory for tpu_custom_call.1']
    #allocation9 [shape = 'u8[131072]{0}', space=vmem, size = 0x20000, scoped, tag = 'input window, operand 2, single buffered']
    #allocation10 [shape = 's32[1]{0}', space=sflag, size = 0x4, scoped, tag = 'scoped memory for tpu_custom_call.1']
    #allocation11 [shape = 'u8[32768]{0}', space=vmem, size = 0x8000, scoped, tag = 'input window, operand 4, single buffered']
    #allocation12 [shape = 'u8[12288]{0}', space=vmem, size = 0x3000, scoped, tag = 'output window, operand 0, single buffered']
    %11 = vsyncpa [#allocation7], 0
    %12 = vsyncpa [#allocation10], 0
    %13 = vsyncpa [#allocation8], 0
    // Predicated region
    $region2: #{tpu_custom_call.1} parent=1 // pred_check
      _
    $region3: #{tpu_custom_call.1} parent=1 // pred_check_branch
      %15 = sbr.rel (0) target = $region5
    $region4: #{tpu_custom_call.1} parent=1 // pred_region
      _
    $region5: #{tpu_custom_call.1} parent=1 // pred_fallthru
      _
    // Predicated region
    $region6: #{tpu_custom_call.1} parent=1 // pred_check
      _
    $region7: #{tpu_custom_call.1} parent=1 // pred_check_branch
      %17 = sbr.rel (0) target = $region9
    $region8: #{tpu_custom_call.1} parent=1 // pred_region
      %s19 = ssub.s32 512, 512
      %20 = vsyncadd [#allocation7], %s19
      %s21 = sshll.u32 [#allocation6], 4
      %s22 = int_to_ptr.vmem [resolvable:$true] %s21
      %27 = dma.hbm_to_vmem [thread:$0]  %s1, 512, %s22, [#allocation7], 256, 256, 16
    $region9: #{tpu_custom_call.1} parent=1 // pred_fallthru
      _
    // Predicated region
    $region10: #{tpu_custom_call.1} parent=1 // pred_check
      _
    $region11: #{tpu_custom_call.1} parent=1 // pred_check_branch
      %29 = sbr.rel (0) target = $region13
    $region12: #{tpu_custom_call.1} parent=1 // pred_region
      %s31 = ssub.s32 4096, 4096
      %32 = vsyncadd [#allocation10], %s31
      %s33 = sshll.u32 [#allocation9], 4
      %s34 = int_to_ptr.vmem [resolvable:$true] %s33
      %39 = dma.hbm_to_vmem [thread:$0]  %s2, 4096, %s34, [#allocation10], 256, 256, 16
    $region13: #{tpu_custom_call.1} parent=1 // pred_fallthru
      _
    // Predicated region
    $region14: #{tpu_custom_call.1} parent=1 // pred_check
      _
    $region15: #{tpu_custom_call.1} parent=1 // pred_check_branch
      %41 = sbr.rel (0) target = $region17
    $region16: #{tpu_custom_call.1} parent=1 // pred_region
      _
    $region17: #{tpu_custom_call.1} parent=1 // pred_fallthru
      _
    // Predicated region
    $region18: #{tpu_custom_call.1} parent=1 // pred_check
      _
    $region19: #{tpu_custom_call.1} parent=1 // pred_check_branch
      %43 = sbr.rel (0) target = $region21
    $region20: #{tpu_custom_call.1} parent=1 // pred_region
      %s45 = ssub.s32 1024, 1024
      %46 = vsyncadd [#allocation10], %s45
      %s47 = sshll.u32 [#allocation11], 4
      %s48 = int_to_ptr.vmem [resolvable:$true] %s47
      %53 = dma.hbm_to_vmem [thread:$0]  %s4, 1024, %s48, [#allocation10], 64, 64, 4
    $region21: #{tpu_custom_call.1} parent=1 // pred_fallthru
      _
    // Predicated region
    $region22: #{tpu_custom_call.1} parent=1 // pred_check
      _
    $region23: #{tpu_custom_call.1} parent=1 // pred_check_branch
      %55 = sbr.rel (0) target = $region25
    $region24: #{tpu_custom_call.1} parent=1 // pred_region
      _
    $region25: #{tpu_custom_call.1} parent=1 // pred_fallthru
      _
    // Predicated region
    $region26: #{tpu_custom_call.1} parent=1 // pred_check
      _
    $region27: #{tpu_custom_call.1} parent=1 // pred_check_branch
      %57 = sbr.rel (0) target = $region29
    $region28: #{tpu_custom_call.1} parent=1 // pred_region
      %58 = dma.done [#allocation7], 512
    $region29: #{tpu_custom_call.1} parent=1 // pred_fallthru
      _
    // Predicated region
    $region30: #{tpu_custom_call.1} parent=1 // pred_check
      _
    $region31: #{tpu_custom_call.1} parent=1 // pred_check_branch
      %60 = sbr.rel (0) target = $region33
    $region32: #{tpu_custom_call.1} parent=1 // pred_region
      %61 = dma.done [#allocation10], 4096
    $region33: #{tpu_custom_call.1} parent=1 // pred_fallthru
      _
    // Predicated region
    $region34: #{tpu_custom_call.1} parent=1 // pred_check
      _
    $region35: #{tpu_custom_call.1} parent=1 // pred_check_branch
      %63 = sbr.rel (0) target = $region37
    $region36: #{tpu_custom_call.1} parent=1 // pred_region
      %64 = dma.done [#allocation10], 1024
    $region37: #{tpu_custom_call.1} parent=1 // pred_fallthru
      _
    %p66 = scmp.eq.s32.totalorder 0, 0
    // Predicated region
    $region38: #{tpu_custom_call.1} parent=1 // pred_check
      %p67 = pneg %p66
    $region39: #{tpu_custom_call.1} parent=1 // pred_check_branch
      %69 = sbr.rel (%p67) target = $region41
    $region40: #{tpu_custom_call.1} parent=1 // pred_region
      %70 = vst [vmem:[#allocation2] sm:$0xff] 0.0
      %71 = vst [vmem:[#allocation3] sm:$0xff] 0.0
    $region41: #{tpu_custom_call.1} parent=1 // pred_fallthru
      _
    %v72 = vld [vmem:[%s0] sm:$0xf]
    %v73 = vld [vmem:[%s0 + $0x4] sm:$0xf]
    %v74 = vld [vmem:[%s0 + $0x8] sm:$0xf]
    %v75 = vld [vmem:[#allocation6] sm:$0xff]
    %v76 = vld [vmem:[#allocation6 + $0x8] sm:$0xff]
    %v77 = vld [vmem:[#allocation6 + $0x10] sm:$0xff]
    %v78 = vld [vmem:[#allocation6 + $0x18] sm:$0xff]
    %v79 = vld [vmem:[%s3] sm:$0xf]
    %v81 = vlaneseq
    %v82 = vshrl.u32 %v81, 7
    %v83 = vsub.s32 0, %v82
    %v84 = vrot.slane %v79, %v83
    %v85 = vlaneseq
    %v86 = vshrl.u32 %v85, 7
    %v87 = vsub.s32 1, %v86
    %v88 = vrot.slane %v79, %v87
    %v89 = vlaneseq
    %v90 = vshrl.u32 %v89, 7
    %v91 = vsub.s32 2, %v90
    %v92 = vrot.slane %v79, %v91
    %v93 = vlaneseq
    %v94 = vshrl.u32 %v93, 7
    %v95 = vsub.s32 3, %v94
    %v96 = vrot.slane %v79, %v95
    %v104 = vunpack.c.l.b16 %v72
    %v105 = vunpack.c.l.b16 %v73
    %v106 = vunpack.c.l.b16 %v74
    %v107 = vpack.c.b16 %v105, %v104
    %v108 = vpack.c.b16 %v106, %v106
    %v113 = vunpack.c.l.b16 %v75
    %v114 = vunpack.c.h.b16 %v75
    %v115 = vunpack.c.l.b16 %v76
    %v116 = vunpack.c.h.b16 %v76
    %v117 = vunpack.c.l.b16 %v77
    %v118 = vunpack.c.h.b16 %v77
    %v119 = vunpack.c.l.b16 %v78
    %v120 = vunpack.c.h.b16 %v78
    %v121 = vpack.c.b16 %v117, %v113
    %v122 = vpack.c.b16 %v118, %v114
    %v123 = vpack.c.b16 %v119, %v115
    %v124 = vpack.c.b16 %v120, %v116
    %vm129 = vcmask 130048
    %v131 = vsel %vm129, %v107, 0
    %v134 = vsel %vm129, %v108, 0
    %136 = vmatprep.subr.bf16.mxu0 0
    %137 = vmatpush1.bf16.msra.mxu0 0
    %138 = vmatprep.subr.bf16.mxu0 0
    %139 = vmatpush1.bf16.msra.mxu0 0
    %140 = vmatprep.subr.bf16.mxu0 0
    %141 = vmatpush1.bf16.msra.mxu0 0
    %142 = vmatprep.subr.bf16.mxu0 0
    %143 = vmatpush1.bf16.msra.mxu0 0
    %144 = vmatprep.subr.bf16.mxu0 0
    %145 = vmatpush1.bf16.msra.mxu0 0
    %146 = vmatprep.subr.bf16.mxu0 0
    %147 = vmatpush1.bf16.msra.mxu0 0
    %148 = vmatprep.subr.bf16.mxu0 0
    %149 = vmatpush1.bf16.msra.mxu0 0
    %150 = vmatprep.subr.bf16.mxu0 %v122
    %151 = vmatpush1.bf16.msra.mxu0 %v121
    %152 = vmatprep.subr.bf16.mxu0 0
    %153 = vmatpush2.bf16.msra.mxu0 0
    %154 = vmatprep.subr.bf16.mxu0 0
    %155 = vmatpush2.bf16.msra.mxu0 0
    %156 = vmatprep.subr.bf16.mxu0 0
    %157 = vmatpush2.bf16.msra.mxu0 0
    %158 = vmatprep.subr.bf16.mxu0 0
    %159 = vmatpush2.bf16.msra.mxu0 0
    %160 = vmatprep.subr.bf16.mxu0 0
    %161 = vmatpush2.bf16.msra.mxu0 0
    %162 = vmatprep.subr.bf16.mxu0 0
    %163 = vmatpush2.bf16.msra.mxu0 0
    %164 = vmatprep.subr.bf16.mxu0 0
    %165 = vmatpush2.bf16.msra.mxu0 0
    %166 = vmatprep.subr.bf16.mxu0 0
    %167 = vmatpush2.bf16.msra.mxu0 0
    %168 = vmatprep.mubr.bf16.mxu0 0
    %169 = vmatmul.mubr.bf16.gmra.mxu0 %v131
    %v170 = vpop.f32.mrf.mxu0
    %v171 = vadd.f32 %v84, %v170
    %v172 = vpop.f32.mrf.mxu0
    %v173 = vadd.f32 %v88, %v172
    %v174 = vpop.f32.mrf.mxu0
    %v175 = vadd.f32 %v84, %v174
    %v176 = vpop.f32.mrf.mxu0
    %v177 = vadd.f32 %v88, %v176
    %178 = vmatprep.mubr.bf16.mxu0 0
    %179 = vmatmul.mubr.bf16.gmra.mxu0 %v134
    %v180 = vpop.f32.mrf.mxu0
    %v181 = vadd.f32 %v84, %v180
    %v182 = vpop.f32.mrf.mxu0
    %v183 = vadd.f32 %v88, %v182
    %v184 = vpop.f32.mrf.mxu0
    %v185 = vpop.f32.mrf.mxu0
    %186 = vdwg.mxu0
    %187 = vmatprep.subr.bf16.mxu0 0
    %188 = vmatpush1.bf16.msra.mxu0 0
    %189 = vmatprep.subr.bf16.mxu0 0
    %190 = vmatpush1.bf16.msra.mxu0 0
    %191 = vmatprep.subr.bf16.mxu0 0
    %192 = vmatpush1.bf16.msra.mxu0 0
    %193 = vmatprep.subr.bf16.mxu0 0
    %194 = vmatpush1.bf16.msra.mxu0 0
    %195 = vmatprep.subr.bf16.mxu0 0
    %196 = vmatpush1.bf16.msra.mxu0 0
    %197 = vmatprep.subr.bf16.mxu0 0
    %198 = vmatpush1.bf16.msra.mxu0 0
    %199 = vmatprep.subr.bf16.mxu0 0
    %200 = vmatpush1.bf16.msra.mxu0 0
    %201 = vmatprep.subr.bf16.mxu0 %v124
    %202 = vmatpush1.bf16.msra.mxu0 %v123
    %203 = vmatprep.subr.bf16.mxu0 0
    %204 = vmatpush2.bf16.msra.mxu0 0
    %205 = vmatprep.subr.bf16.mxu0 0
    %206 = vmatpush2.bf16.msra.mxu0 0
    %207 = vmatprep.subr.bf16.mxu0 0
    %208 = vmatpush2.bf16.msra.mxu0 0
    %209 = vmatprep.subr.bf16.mxu0 0
    %210 = vmatpush2.bf16.msra.mxu0 0
    %211 = vmatprep.subr.bf16.mxu0 0
    %212 = vmatpush2.bf16.msra.mxu0 0
    %213 = vmatprep.subr.bf16.mxu0 0
    %214 = vmatpush2.bf16.msra.mxu0 0
    %215 = vmatprep.subr.bf16.mxu0 0
    %216 = vmatpush2.bf16.msra.mxu0 0
    %217 = vmatprep.subr.bf16.mxu0 0
    %218 = vmatpush2.bf16.msra.mxu0 0
    %219 = vmatprep.mubr.bf16.mxu0 0
    %220 = vmatmul.mubr.bf16.gmra.mxu0 %v131
    %v221 = vpop.f32.mrf.mxu0
    %v222 = vadd.f32 %v92, %v221
    %v223 = vpop.f32.mrf.mxu0
    %v224 = vadd.f32 %v96, %v223
    %v225 = vpop.f32.mrf.mxu0
    %v226 = vadd.f32 %v92, %v225
    %v227 = vpop.f32.mrf.mxu0
    %v228 = vadd.f32 %v96, %v227
    %229 = vmatprep.mubr.bf16.mxu0 0
    %230 = vmatmul.mubr.bf16.gmra.mxu0 %v134
    %v231 = vpop.f32.mrf.mxu0
    %v232 = vadd.f32 %v92, %v231
    %v233 = vpop.f32.mrf.mxu0
    %v234 = vadd.f32 %v96, %v233
    %v235 = vpop.f32.mrf.mxu0
    %v236 = vpop.f32.mrf.mxu0
    %237 = vdwg.mxu0
    %238 = vst [vmem:[#allocation4] sm:$0xff] %v171
    %239 = vst [vmem:[#allocation4 + $0x8] sm:$0xff] %v173
    %240 = vst [vmem:[#allocation4 + $0x10] sm:$0xff] %v222
    %241 = vst [vmem:[#allocation4 + $0x18] sm:$0xff] %v224
    %242 = vst [vmem:[#allocation4 + $0x20] sm:$0xff] %v175
    %243 = vst [vmem:[#allocation4 + $0x28] sm:$0xff] %v177
    %244 = vst [vmem:[#allocation4 + $0x30] sm:$0xff] %v226
    %245 = vst [vmem:[#allocation4 + $0x38] sm:$0xff] %v228
    %246 = vst [vmem:[#allocation4 + $0x40] sm:$0xff] %v181
    %247 = vst [vmem:[#allocation4 + $0x48] sm:$0xff] %v183
    %248 = vst [vmem:[#allocation4 + $0x50] sm:$0xff] %v232
    %249 = vst [vmem:[#allocation4 + $0x58] sm:$0xff] %v234
    %v250 = vld [vmem:[#allocation9] sm:$0xff]
    %v251 = vld [vmem:[#allocation9 + $0x8] sm:$0xff]
    %v252 = vld [vmem:[#allocation9 + $0x10] sm:$0xff]
    %v253 = vld [vmem:[#allocation9 + $0x18] sm:$0xff]
    %v254 = vld [vmem:[#allocation9 + $0x20] sm:$0xff]
    %v255 = vld [vmem:[#allocation9 + $0x28] sm:$0xff]
    %v256 = vld [vmem:[#allocation9 + $0x30] sm:$0xff]
    %v257 = vld [vmem:[#allocation9 + $0x38] sm:$0xff]
    %v258 = vld [vmem:[#allocation9 + $0x40] sm:$0xff]
    %v259 = vld [vmem:[#allocation9 + $0x48] sm:$0xff]
    %v260 = vld [vmem:[#allocation9 + $0x50] sm:$0xff]
    %v261 = vld [vmem:[#allocation9 + $0x58] sm:$0xff]
    %v262 = vld [vmem:[#allocation9 + $0x60] sm:$0xff]
    %v263 = vld [vmem:[#allocation9 + $0x68] sm:$0xff]
    %v264 = vld [vmem:[#allocation9 + $0x70] sm:$0xff]
    %v265 = vld [vmem:[#allocation9 + $0x78] sm:$0xff]
    %v266 = vld [vmem:[#allocation9 + $0x80] sm:$0xff]
    %v267 = vld [vmem:[#allocation9 + $0x88] sm:$0xff]
    %v268 = vld [vmem:[#allocation9 + $0x90] sm:$0xff]
    %v269 = vld [vmem:[#allocation9 + $0x98] sm:$0xff]
    %v270 = vld [vmem:[#allocation9 + $0xa0] sm:$0xff]
    %v271 = vld [vmem:[#allocation9 + $0xa8] sm:$0xff]
    %v272 = vld [vmem:[#allocation9 + $0xb0] sm:$0xff]
    %v273 = vld [vmem:[#allocation9 + $0xb8] sm:$0xff]
    %v274 = vld [vmem:[#allocation9 + $0xc0] sm:$0xff]
    %v275 = vld [vmem:[#allocation9 + $0xc8] sm:$0xff]
    %v276 = vld [vmem:[#allocation9 + $0xd0] sm:$0xff]
    %v277 = vld [vmem:[#allocation9 + $0xd8] sm:$0xff]
    %v278 = vld [vmem:[#allocation9 + $0xe0] sm:$0xff]
    %v279 = vld [vmem:[#allocation9 + $0xe8] sm:$0xff]
    %v280 = vld [vmem:[#allocation9 + $0xf0] sm:$0xff]
    %v281 = vld [vmem:[#allocation9 + $0xf8] sm:$0xff]
    loop: start=0, step=1, limit=3
    $region42: #{tpu_custom_call.1} parent=1 // loop_pre_header
      _
    $region43: #{tpu_custom_call.1} parent=1 // loop_header
      %s283 = sphi 0, %s287
      %p284 = scmp.ge.s32.totalorder %s283, 3
    $region44: #{tpu_custom_call.1} parent=1 // loop_header_branch
      %286 = sbr.rel (%p284) target = $region48
    $region45: #{tpu_custom_call.1} parent=1 // loop_body
      %s288 = smul.u32 %s283, 8
      %v289 = vld [vmem:[#allocation2] sm:$0xff]
      %v290 = vld [vmem:[#allocation3] sm:$0xff]
      %s291 = sshra.s32 %s288, 3
      %s292 = sand.u32 %s288, 7
      %s293 = smul.u32 %s291, 4
      %s294 = smul.addr %s293, 8
      %s295 = scalar_lea.vmem [#allocation4], %s294
      %v296 = vld [vmem:[%s295] sm:$0xff]
      %v297 = vld [vmem:[%s295 + $0x8] sm:$0xff]
      %v298 = vld [vmem:[%s295 + $0x10] sm:$0xff]
      %v299 = vld [vmem:[%s295 + $0x18] sm:$0xff]
      %v300 = vpack.c.bf16 %v289, %v289
      %v333 = vunpack.c.l.b16 %v250
      %v334 = vunpack.c.h.b16 %v250
      %v335 = vunpack.c.l.b16 %v251
      %v336 = vunpack.c.h.b16 %v251
      %v337 = vunpack.c.l.b16 %v252
      %v338 = vunpack.c.h.b16 %v252
      %v339 = vunpack.c.l.b16 %v253
      %v340 = vunpack.c.h.b16 %v253
      %v341 = vunpack.c.l.b16 %v254
      %v342 = vunpack.c.h.b16 %v254
      %v343 = vunpack.c.l.b16 %v255
      %v344 = vunpack.c.h.b16 %v255
      %v345 = vunpack.c.l.b16 %v256
      %v346 = vunpack.c.h.b16 %v256
      %v347 = vunpack.c.l.b16 %v257
      %v348 = vunpack.c.h.b16 %v257
      %v349 = vunpack.c.l.b16 %v258
      %v350 = vunpack.c.h.b16 %v258
      %v351 = vunpack.c.l.b16 %v259
      %v352 = vunpack.c.h.b16 %v259
      %v353 = vunpack.c.l.b16 %v260
      %v354 = vunpack.c.h.b16 %v260
      %v355 = vunpack.c.l.b16 %v261
      %v356 = vunpack.c.h.b16 %v261
      %v357 = vunpack.c.l.b16 %v262
      %v358 = vunpack.c.h.b16 %v262
      %v359 = vunpack.c.l.b16 %v263
      %v360 = vunpack.c.h.b16 %v263
      %v361 = vunpack.c.l.b16 %v264
      %v362 = vunpack.c.h.b16 %v264
      %v363 = vunpack.c.l.b16 %v265
      %v364 = vunpack.c.h.b16 %v265
      %v365 = vunpack.c.l.b16 %v266
      %v366 = vunpack.c.h.b16 %v266
      %v367 = vunpack.c.l.b16 %v267
      %v368 = vunpack.c.h.b16 %v267
      %v369 = vunpack.c.l.b16 %v268
      %v370 = vunpack.c.h.b16 %v268
      %v371 = vunpack.c.l.b16 %v269
      %v372 = vunpack.c.h.b16 %v269
      %v373 = vunpack.c.l.b16 %v270
      %v374 = vunpack.c.h.b16 %v270
      %v375 = vunpack.c.l.b16 %v271
      %v376 = vunpack.c.h.b16 %v271
      %v377 = vunpack.c.l.b16 %v272
      %v378 = vunpack.c.h.b16 %v272
      %v379 = vunpack.c.l.b16 %v273
      %v380 = vunpack.c.h.b16 %v273
      %v381 = vunpack.c.l.b16 %v274
      %v382 = vunpack.c.h.b16 %v274
      %v383 = vunpack.c.l.b16 %v275
      %v384 = vunpack.c.h.b16 %v275
      %v385 = vunpack.c.l.b16 %v276
      %v386 = vunpack.c.h.b16 %v276
      %v387 = vunpack.c.l.b16 %v277
      %v388 = vunpack.c.h.b16 %v277
      %v389 = vunpack.c.l.b16 %v278
      %v390 = vunpack.c.h.b16 %v278
      %v391 = vunpack.c.l.b16 %v279
      %v392 = vunpack.c.h.b16 %v279
      %v393 = vunpack.c.l.b16 %v280
      %v394 = vunpack.c.h.b16 %v280
      %v395 = vunpack.c.l.b16 %v281
      %v396 = vunpack.c.h.b16 %v281
      %v397 = vpack.c.b16 %v337, %v333
      %v398 = vpack.c.b16 %v338, %v334
      %v399 = vpack.c.b16 %v339, %v335
      %v400 = vpack.c.b16 %v340, %v336
      %v401 = vpack.c.b16 %v345, %v341
      %v402 = vpack.c.b16 %v346, %v342
      %v403 = vpack.c.b16 %v347, %v343
      %v404 = vpack.c.b16 %v348, %v344
      %v405 = vpack.c.b16 %v353, %v349
      %v406 = vpack.c.b16 %v354, %v350
      %v407 = vpack.c.b16 %v355, %v351
      %v408 = vpack.c.b16 %v356, %v352
      %v409 = vpack.c.b16 %v361, %v357
      %v410 = vpack.c.b16 %v362, %v358
      %v411 = vpack.c.b16 %v363, %v359
      %v412 = vpack.c.b16 %v364, %v360
      %v413 = vpack.c.b16 %v369, %v365
      %v414 = vpack.c.b16 %v370, %v366
      %v415 = vpack.c.b16 %v371, %v367
      %v416 = vpack.c.b16 %v372, %v368
      %v417 = vpack.c.b16 %v377, %v373
      %v418 = vpack.c.b16 %v378, %v374
      %v419 = vpack.c.b16 %v379, %v375
      %v420 = vpack.c.b16 %v380, %v376
      %v421 = vpack.c.b16 %v385, %v381
      %v422 = vpack.c.b16 %v386, %v382
      %v423 = vpack.c.b16 %v387, %v383
      %v424 = vpack.c.b16 %v388, %v384
      %v425 = vpack.c.b16 %v393, %v389
      %v426 = vpack.c.b16 %v394, %v390
      %v427 = vpack.c.b16 %v395, %v391
      %v428 = vpack.c.b16 %v396, %v392
      %461 = vmatprep.subr.bf16.mxu0 %v426
      %462 = vmatpush1.bf16.msra.mxu0 %v425
      %463 = vmatprep.subr.bf16.mxu0 %v422
      %464 = vmatpush1.bf16.msra.mxu0 %v421
      %465 = vmatprep.subr.bf16.mxu0 %v418
      %466 = vmatpush1.bf16.msra.mxu0 %v417
      %467 = vmatprep.subr.bf16.mxu0 %v414
      %468 = vmatpush1.bf16.msra.mxu0 %v413
      %469 = vmatprep.subr.bf16.mxu0 %v410
      %470 = vmatpush1.bf16.msra.mxu0 %v409
      %471 = vmatprep.subr.bf16.mxu0 %v406
      %472 = vmatpush1.bf16.msra.mxu0 %v405
      %473 = vmatprep.subr.bf16.mxu0 %v402
      %474 = vmatpush1.bf16.msra.mxu0 %v401
      %475 = vmatprep.subr.bf16.mxu0 %v398
      %476 = vmatpush1.bf16.msra.mxu0 %v397
      %477 = vmatprep.subr.bf16.mxu0 0
      %478 = vmatpush2.bf16.msra.mxu0 0
      %479 = vmatprep.subr.bf16.mxu0 0
      %480 = vmatpush2.bf16.msra.mxu0 0
      %481 = vmatprep.subr.bf16.mxu0 0
      %482 = vmatpush2.bf16.msra.mxu0 0
      %483 = vmatprep.subr.bf16.mxu0 0
      %484 = vmatpush2.bf16.msra.mxu0 0
      %485 = vmatprep.subr.bf16.mxu0 0
      %486 = vmatpush2.bf16.msra.mxu0 0
      %487 = vmatprep.subr.bf16.mxu0 0
      %488 = vmatpush2.bf16.msra.mxu0 0
      %489 = vmatprep.subr.bf16.mxu0 0
      %490 = vmatpush2.bf16.msra.mxu0 0
      %491 = vmatprep.subr.bf16.mxu0 0
      %492 = vmatpush2.bf16.msra.mxu0 0
      %493 = vmatprep.mubr.bf16.mxu0 0
      %494 = vmatmul.mubr.bf16.gmra.mxu0 %v300
      %v495 = vpop.f32.mrf.mxu0
      %v496 = vadd.f32 0.0, %v495
      %v497 = vpop.f32.mrf.mxu0
      %v498 = vadd.f32 0.0, %v497
      %v499 = vpop.f32.mrf.mxu0
      %v500 = vpop.f32.mrf.mxu0
      %501 = vdwg.mxu0
      %502 = vmatprep.subr.bf16.mxu0 %v428
      %503 = vmatpush1.bf16.msra.mxu0 %v427
      %504 = vmatprep.subr.bf16.mxu0 %v424
      %505 = vmatpush1.bf16.msra.mxu0 %v423
      %506 = vmatprep.subr.bf16.mxu0 %v420
      %507 = vmatpush1.bf16.msra.mxu0 %v419
      %508 = vmatprep.subr.bf16.mxu0 %v416
      %509 = vmatpush1.bf16.msra.mxu0 %v415
      %510 = vmatprep.subr.bf16.mxu0 %v412
      %511 = vmatpush1.bf16.msra.mxu0 %v411
      %512 = vmatprep.subr.bf16.mxu0 %v408
      %513 = vmatpush1.bf16.msra.mxu0 %v407
      %514 = vmatprep.subr.bf16.mxu0 %v404
      %515 = vmatpush1.bf16.msra.mxu0 %v403
      %516 = vmatprep.subr.bf16.mxu0 %v400
      %517 = vmatpush1.bf16.msra.mxu0 %v399
      %518 = vmatprep.subr.bf16.mxu0 0
      %519 = vmatpush2.bf16.msra.mxu0 0
      %520 = vmatprep.subr.bf16.mxu0 0
      %521 = vmatpush2.bf16.msra.mxu0 0
      %522 = vmatprep.subr.bf16.mxu0 0
      %523 = vmatpush2.bf16.msra.mxu0 0
      %524 = vmatprep.subr.bf16.mxu0 0
      %525 = vmatpush2.bf16.msra.mxu0 0
      %526 = vmatprep.subr.bf16.mxu0 0
      %527 = vmatpush2.bf16.msra.mxu0 0
      %528 = vmatprep.subr.bf16.mxu0 0
      %529 = vmatpush2.bf16.msra.mxu0 0
      %530 = vmatprep.subr.bf16.mxu0 0
      %531 = vmatpush2.bf16.msra.mxu0 0
      %532 = vmatprep.subr.bf16.mxu0 0
      %533 = vmatpush2.bf16.msra.mxu0 0
      %534 = vmatprep.mubr.bf16.mxu0 0
      %535 = vmatmul.mubr.bf16.gmra.mxu0 %v300
      %v536 = vpop.f32.mrf.mxu0
      %v537 = vadd.f32 0.0, %v536
      %v538 = vpop.f32.mrf.mxu0
      %v539 = vadd.f32 0.0, %v538
      %v540 = vpop.f32.mrf.mxu0
      %v541 = vpop.f32.mrf.mxu0
      %542 = vdwg.mxu0
      %v543 = vadd.f32 %v296, %v496
      %v544 = vadd.f32 %v297, %v498
      %v545 = vadd.f32 %v298, %v537
      %v546 = vadd.f32 %v299, %v539
      %v547 = vxor.u32 %v543, 2147483648
      %v548 = vmul.f32 %v547, 1.442695
      %v549 = vpow.pop %v548
      %v550 = vadd.f32 %v549, 1.0
      %v551 = vrcp.pop %v550
      %v552 = vmul.f32 1.0, %v551
      %v553 = vxor.u32 %v544, 2147483648
      %v554 = vmul.f32 %v553, 1.442695
      %v555 = vpow.pop %v554
      %v556 = vadd.f32 %v555, 1.0
      %v557 = vrcp.pop %v556
      %v558 = vmul.f32 1.0, %v557
      %v559 = vtanh.pop %v545
      %v560 = vxor.u32 %v546, 2147483648
      %v561 = vmul.f32 %v560, 1.442695
      %v562 = vpow.pop %v561
      %v563 = vadd.f32 %v562, 1.0
      %v564 = vrcp.pop %v563
      %v565 = vmul.f32 1.0, %v564
      %v566 = vmul.f32 %v552, %v290
      %v567 = vmul.f32 %v558, %v559
      %v568 = vadd.f32 %v566, %v567
      %v569 = vtanh.pop %v568
      %v570 = vmul.f32 %v565, %v569
      %571 = vst [vmem:[#allocation3] sm:$0xff] %v568
      %572 = vst [vmem:[#allocation2] sm:$0xff] %v570
      %s573 = scalar_lea.vmem [#allocation5], %s288
      %574 = vst [vmem:[%s573] sm:$0xff] %v570
    $region46: #{tpu_custom_call.1} parent=1 // loop_footer
      %s287 = sadd.s32 1, %s283
    $region47: #{tpu_custom_call.1} parent=1 // loop_footer_branch
      %282 = sbr.rel target = $region43
    $region48: #{tpu_custom_call.1} parent=1 // loop_exit
      _
    %v575 = vld [vmem:[#allocation5] sm:$0xff]
    %v576 = vld [vmem:[#allocation5 + $0x8] sm:$0xff]
    %v577 = vld [vmem:[#allocation5 + $0x10] sm:$0xff]
    %v578 = vpack.c.bf16 %v576, %v575
    %v579 = vpack.c.bf16 %v577, %v577
    %v580 = vld [vmem:[#allocation11] sm:$0xf]
    %v581 = vld [vmem:[#allocation11 + $0x4] sm:$0xf]
    %v582 = vld [vmem:[#allocation11 + $0x8] sm:$0xf]
    %v583 = vld [vmem:[#allocation11 + $0xc] sm:$0xf]
    %v584 = vld [vmem:[#allocation11 + $0x10] sm:$0xf]
    %v585 = vld [vmem:[#allocation11 + $0x14] sm:$0xf]
    %v586 = vld [vmem:[#allocation11 + $0x18] sm:$0xf]
    %v587 = vld [vmem:[#allocation11 + $0x1c] sm:$0xf]
    %v588 = vld [vmem:[#allocation11 + $0x20] sm:$0xf]
    %v589 = vld [vmem:[#allocation11 + $0x24] sm:$0xf]
    %v590 = vld [vmem:[#allocation11 + $0x28] sm:$0xf]
    %v591 = vld [vmem:[#allocation11 + $0x2c] sm:$0xf]
    %v592 = vld [vmem:[#allocation11 + $0x30] sm:$0xf]
    %v593 = vld [vmem:[#allocation11 + $0x34] sm:$0xf]
    %v594 = vld [vmem:[#allocation11 + $0x38] sm:$0xf]
    %v595 = vld [vmem:[#allocation11 + $0x3c] sm:$0xf]
    %v596 = vld [vmem:[%s5] sm:$0x1]
    %v598 = vlaneseq
    %v599 = vshrl.u32 %v598, 7
    %v600 = vsub.s32 0, %v599
    %v601 = vrot.slane %v596, %v600
    %v619 = vunpack.c.l.b16 %v580
    %v620 = vunpack.c.l.b16 %v581
    %v621 = vunpack.c.l.b16 %v582
    %v622 = vunpack.c.l.b16 %v583
    %v623 = vunpack.c.l.b16 %v584
    %v624 = vunpack.c.l.b16 %v585
    %v625 = vunpack.c.l.b16 %v586
    %v626 = vunpack.c.l.b16 %v587
    %v627 = vunpack.c.l.b16 %v588
    %v628 = vunpack.c.l.b16 %v589
    %v629 = vunpack.c.l.b16 %v590
    %v630 = vunpack.c.l.b16 %v591
    %v631 = vunpack.c.l.b16 %v592
    %v632 = vunpack.c.l.b16 %v593
    %v633 = vunpack.c.l.b16 %v594
    %v634 = vunpack.c.l.b16 %v595
    %v635 = vpack.c.b16 %v620, %v619
    %v636 = vpack.c.b16 %v622, %v621
    %v637 = vpack.c.b16 %v624, %v623
    %v638 = vpack.c.b16 %v626, %v625
    %v639 = vpack.c.b16 %v628, %v627
    %v640 = vpack.c.b16 %v630, %v629
    %v641 = vpack.c.b16 %v632, %v631
    %v642 = vpack.c.b16 %v634, %v633
    %651 = vmatprep.subr.bf16.mxu0 0
    %652 = vmatpush1.bf16.msra.mxu0 %v642
    %653 = vmatprep.subr.bf16.mxu0 0
    %654 = vmatpush1.bf16.msra.mxu0 %v641
    %655 = vmatprep.subr.bf16.mxu0 0
    %656 = vmatpush1.bf16.msra.mxu0 %v640
    %657 = vmatprep.subr.bf16.mxu0 0
    %658 = vmatpush1.bf16.msra.mxu0 %v639
    %659 = vmatprep.subr.bf16.mxu0 0
    %660 = vmatpush1.bf16.msra.mxu0 %v638
    %661 = vmatprep.subr.bf16.mxu0 0
    %662 = vmatpush1.bf16.msra.mxu0 %v637
    %663 = vmatprep.subr.bf16.mxu0 0
    %664 = vmatpush1.bf16.msra.mxu0 %v636
    %665 = vmatprep.subr.bf16.mxu0 0
    %666 = vmatpush1.bf16.msra.mxu0 %v635
    %667 = vmatprep.subr.bf16.mxu0 0
    %668 = vmatpush2.bf16.msra.mxu0 0
    %669 = vmatprep.subr.bf16.mxu0 0
    %670 = vmatpush2.bf16.msra.mxu0 0
    %671 = vmatprep.subr.bf16.mxu0 0
    %672 = vmatpush2.bf16.msra.mxu0 0
    %673 = vmatprep.subr.bf16.mxu0 0
    %674 = vmatpush2.bf16.msra.mxu0 0
    %675 = vmatprep.subr.bf16.mxu0 0
    %676 = vmatpush2.bf16.msra.mxu0 0
    %677 = vmatprep.subr.bf16.mxu0 0
    %678 = vmatpush2.bf16.msra.mxu0 0
    %679 = vmatprep.subr.bf16.mxu0 0
    %680 = vmatpush2.bf16.msra.mxu0 0
    %681 = vmatprep.subr.bf16.mxu0 0
    %682 = vmatpush2.bf16.msra.mxu0 0
    %683 = vmatprep.mubr.bf16.mxu0 0
    %684 = vmatmul.mubr.bf16.gmra.mxu0 %v578
    %v685 = vpop.f32.mrf.mxu0
    %v686 = vadd.f32 %v601, %v685
    %v687 = vpop.f32.mrf.mxu0
    %v688 = vpop.f32.mrf.mxu0
    %v689 = vadd.f32 %v601, %v688
    %v690 = vpop.f32.mrf.mxu0
    %691 = vmatprep.mubr.bf16.mxu0 0
    %692 = vmatmul.mubr.bf16.gmra.mxu0 %v579
    %v693 = vpop.f32.mrf.mxu0
    %v694 = vadd.f32 %v601, %v693
    %v695 = vpop.f32.mrf.mxu0
    %v696 = vpop.f32.mrf.mxu0
    %v697 = vpop.f32.mrf.mxu0
    %698 = vdwg.mxu0
    %699 = vst [vmem:[#allocation12] sm:$0xff] %v686
    %700 = vst [vmem:[#allocation12 + $0x8] sm:$0xff] %v689
    %701 = vst [vmem:[#allocation12 + $0x10] sm:$0xff] %v694
    // Predicated region
    $region49: #{tpu_custom_call.1} parent=1 // pred_check
      _
    $region50: #{tpu_custom_call.1} parent=1 // pred_check_branch
      %703 = sbr.rel (0) target = $region52
    $region51: #{tpu_custom_call.1} parent=1 // pred_region
      %s705 = ssub.s32 384, 384
      %706 = vsyncadd [#allocation8], %s705
      %s707 = sshll.u32 [#allocation12], 4
      %s708 = int_to_ptr.vmem [resolvable:$true] %s707
      %713 = dma.vmem_to_hbm [thread:$0]  %s708, 384, %s6, [#allocation8], 128, 128, 8
    $region52: #{tpu_custom_call.1} parent=1 // pred_fallthru
      _
    // Predicated region
    $region53: #{tpu_custom_call.1} parent=1 // pred_check
      _
    $region54: #{tpu_custom_call.1} parent=1 // pred_check_branch
      %715 = sbr.rel (0) target = $region56
    $region55: #{tpu_custom_call.1} parent=1 // pred_region
      %716 = dma.done [#allocation8], 384
    $region56: #{tpu_custom_call.1} parent=1 // pred_fallthru
      _
    %717 = vsyncpa [#allocation7], 1
    %718 = vsyncpa [#allocation10], 1
    %719 = vsyncpa [#allocation8], 1

</llo_original>
